<compile_context>
chip_gen: v7x
topology: tpu7x:2x2x1
jax: 0.10.0
libtpu: 0.0.40
codegen_flags: <defaults>
</compile_context>

<pallas_src>
import functools

import jax
import jax.numpy as jnp
from jax.experimental import pallas as pl
from jax.experimental.pallas import tpu as pltpu


# ------------------------------------------------------------------ helpers
_SQRT_2_OVER_PI = 0.7978845608028654

# rows of the f32 "vector" parameter slab
(_VEC_G1, _VEC_B1, _VEC_BFUSED, _VEC_G2, _VEC_B2,
 _VEC_BOUT, _VEC_BM1, _VEC_BM2, _VEC_SCALE) = range(9)
_N_VEC_ROWS = 9
_N_CONV_ROWS = 3


def _round_up(n, m):
    return ((n + m - 1) // m) * m


def _sigmoid(x):
    # one EUP tanh push instead of exp + reciprocal/divide
    return 0.5 * (jnp.tanh(0.5 * x) + 1.0)


def _silu(x):
    return x * _sigmoid(x)


def _gelu(x):
    # tanh-approx GELU (EUP tanh); torch uses exact erf GELU (~1e-3 difference).
    # TODO(synk): switch to exact erf if Mosaic gains a native erf lowering.
    return 0.5 * x * (1.0 + jnp.tanh(_SQRT_2_OVER_PI * (x + 0.044715 * x * x * x)))


def _layernorm(x, g, b, eps=1e-5):
    mu = jnp.mean(x, axis=-1, keepdims=True)
    xc = x - mu
    var = jnp.mean(xc * xc, axis=-1, keepdims=True)
    return xc * jax.lax.rsqrt(var + eps) * g + b


def _l2_normalize(x, eps=1e-12):
    # == x / max(||x||, eps)  (F.normalize), with a single rsqrt.
    ss = jnp.sum(x * x, axis=-1, keepdims=True)
    return x * jax.lax.rsqrt(jnp.maximum(ss, eps * eps))


def _wslab_layout(H, E):
    """(row, col) offsets inside the packed bf16 matrix slab."""
    width = _round_up(max(4 * E, 4 * H, 2 * H), 128)
    lay, r = {}, 0
    lay["w_fused"] = (r, 0)
    r += _round_up(H, 8)
    lay["wm1"] = (r, 0)
    r += _round_up(H, 8)
    lay["wm2"] = (r, 0)
    wout_col = _round_up(H, 128)                # lane-tile aligned free columns
    if wout_col + H <= width and E <= 4 * H:
        lay["wout"] = (r, wout_col)             # co-located next to wm2
        r += _round_up(4 * H, 8)
    else:
        r += _round_up(4 * H, 8)
        lay["wout"] = (r, 0)
        r += _round_up(E, 8)
    return lay, _round_up(r, 8), width


# ------------------------------------------------------------------ kernel
def _deltanet_kernel(x_ref, w_ref, p_ref, y_ref, *, H, E, L, TB, wlay):
    f32, bf16 = jnp.float32, jnp.bfloat16
    R = TB * L
    E2, E3, E4, H4 = 2 * E, 3 * E, 4 * E, 4 * H

    # -------- packed parameters (static, aligned slab slices)
    def wmat(name, nrows, ncols):
        r0, c0 = wlay[name]
        return w_ref[r0:r0 + nrows, c0:c0 + ncols]       # bf16

    w_fused = wmat("w_fused", H, E4)    # [wq | wk | wv | wb_eff]
    wm1 = wmat("wm1", H, H4)
    wm2 = wmat("wm2", H4, H)
    wout = wmat("wout", E, H)

    def pvec(idx, n):
        return p_ref[idx:idx + 1, 0:n]                   # f32

    g1, b1 = pvec(_VEC_G1, H), pvec(_VEC_B1, H)
    b_fused = pvec(_VEC_BFUSED, E4)
    g2, b2 = pvec(_VEC_G2, E), pvec(_VEC_B2, E)
    bout = pvec(_VEC_BOUT, H)
    bm1, bm2 = pvec(_VEC_BM1, H4), pvec(_VEC_BM2, H)
    scale = pvec(_VEC_SCALE, 1)
    conv3 = p_ref[_N_VEC_ROWS:_N_VEC_ROWS + _N_CONV_ROWS, 0:E3]   # (3, 3E) f32

    # -------- block body (all row-wise work flattened to (TB*L, ...))
    x = x_ref[...].reshape(R, H)                         # f32
    xn = _layernorm(x, g1, b1)                           # f32 statistics

    # fused q|k|v|(folded positional) beta projection: one (R,H)x(H,4E) bf16 dot
    proj = jnp.dot(xn.astype(bf16), w_fused, preferred_element_type=f32) + b_fused

    # independent activation / reduction work first (lets the XLU reductions,
    # EUP pushes and the MXU overlap before the sequential q->k mixing)
    qk0 = _silu(proj[:, 0:E2])                           # silu(q) & silu(k) in one 128-lane op
    v0 = _gelu(proj[:, E2:E3])
    beta = _sigmoid(proj[:, E3:E4]) * 0.9 + 0.1
    q0, k0 = qk0[:, 0:E], qk0[:, E:E2]
    nq = _l2_normalize(q0)                               # both norms on pre-mix values
    nk = _l2_normalize(k0)                               # (PyTorch evaluation order)
    q = nq + 0.1 * k0
    k = nk + 0.1 * q

    # single fused depthwise conv1d (kernel=3, padding=1, groups) over [q|k|v];
    # per-batch sequence-edge masks so rolls never leak across batch rows.
    qkv = jnp.concatenate([q, k, v0], axis=1)            # (R, 3E)
    row = jax.lax.broadcasted_iota(jnp.int32, (R, E3), 0)
    not_first = (row % L) != 0
    not_last = (row % L) != L - 1
    prev = jnp.where(not_first, pltpu.roll(qkv, shift=1, axis=0), 0.0)
    nxt = jnp.where(not_last, pltpu.roll(qkv, shift=R - 1, axis=0), 0.0)
    qkv = conv3[0:1, :] * prev + conv3[1:2, :] * qkv + conv3[2:3, :] * nxt
    q, k, v = qkv[:, 0:E], qkv[:, E:E2], qkv[:, E2:E3]

    # delta rule: state starts at zero and is updated exactly once, so
    # v_old == 0 identically and v_new = beta*v.  Batched over TB via einsum.
    v_new = beta * v                                     # f32
    q3 = q.reshape(TB, L, E).astype(bf16)
    k3 = k.reshape(TB, L, E).astype(bf16)
    vn3 = v_new.reshape(TB, L, E).astype(bf16)
    state_t = jnp.einsum("ble,blf->bef", k3, vn3,
                         preferred_element_type=f32)     # (TB,E,E) = state^T, f32 accum
    out = jnp.einsum("ble,bef->blf", q3, state_t.astype(bf16),
                     preferred_element_type=f32).reshape(R, E)
    out = out * scale
    out = _layernorm(out, g2, b2)
    out = jnp.dot(out.astype(bf16), wout, preferred_element_type=f32) + bout

    x2 = x + out
    x2n = _layernorm(x2, g1, b1)                         # module reuses norm1 before the MLP
    h = _gelu(jnp.dot(x2n.astype(bf16), wm1, preferred_element_type=f32) + bm1)
    m = jnp.dot(h.astype(bf16), wm2, preferred_element_type=f32) + bm2
    y_ref[...] = (x2 + m).reshape(TB, L, H).astype(y_ref.dtype)


# ------------------------------------------------------------------ packing
def _pack_params(params, L, H, E):
    f32, bf16 = jnp.float32, jnp.bfloat16
    wlay, wrows, wwidth = _wslab_layout(H, E)

    # Fold the positional path into the beta weight (valid for this L only):
    #   mean_j(xn @ rel_pos[:L].T)[i] = xn[i] @ pos_vec, pos_vec = rel_pos[:L].mean(0)
    #   => beta_logits = xn @ (wbA + outer(pos_vec, wbB.sum(0))) + bb
    pos_vec = jnp.mean(params["rel_pos"][:L], axis=0)                       # (H,)
    wb_eff = params["wbA_t"] + pos_vec[:, None] * jnp.sum(params["wbB_t"], axis=0)[None, :]
    w_fused = jnp.concatenate(
        [params["wq_t"], params["wk_t"], params["wv_t"], wb_eff], axis=1)   # (H, 4E)
    b_fused = jnp.concatenate(
        [params["bq"], params["bk"], params["bv"], params["bb"]], axis=0)   # (4E,)

    wslab = jnp.zeros((wrows, wwidth), bf16)

    def put(s, name, arr):
        r0, c0 = wlay[name]
        return s.at[r0:r0 + arr.shape[0], c0:c0 + arr.shape[1]].set(arr.astype(bf16))

    wslab = put(wslab, "w_fused", w_fused)
    wslab = put(wslab, "wm1", params["wm1_t"])
    wslab = put(wslab, "wm2", params["wm2_t"])
    wslab = put(wslab, "wout", params["wout_t"])

    vwidth = _round_up(max(4 * E, 4 * H, 3 * E, H), 128)
    vrows = _round_up(_N_VEC_ROWS + _N_CONV_ROWS, 8)
    vslab = jnp.zeros((vrows, vwidth), f32)

    def putv(s, idx, v):
        v = jnp.reshape(v, (-1,)).astype(f32)
        return s.at[idx, 0:v.shape[0]].set(v)

    for idx, v in ((_VEC_G1, params["g1"]), (_VEC_B1, params["b1"]),
                   (_VEC_BFUSED, b_fused), (_VEC_G2, params["g2"]),
                   (_VEC_B2, params["b2"]), (_VEC_BOUT, params["bout"]),
                   (_VEC_BM1, params["bm1"]), (_VEC_BM2, params["bm2"]),
                   (_VEC_SCALE, params["scale"])):
        vslab = putv(vslab, idx, v)
    conv3 = jnp.tile(params["conv_w"], (1, 3))                              # same filter for q/k/v
    vslab = vslab.at[_N_VEC_ROWS:_N_VEC_ROWS + _N_CONV_ROWS, 0:3 * E].set(conv3)
    return wslab, vslab, wlay


def _pick_tb(B, L, H, E):
    """Batch elements per grid step.  Default targets >=2 grid steps (keeps
    both v7x TensorCores busy); cap the per-step footprint against a
    conservative VMEM budget (v7x: 64 MiB physical / 32 MiB scoped default).
    On v6e (single TC, 128 MiB) a larger TB would also be fine."""
    per_b = L * H * 4 * 4 + 12 * L * max(4 * E, 4 * H) * 4   # blocks + live temps
    tb_cap = max(1, (24 << 20) // per_b)
    tb = min(max(1, B // 2), tb_cap)
    while B % tb:
        tb -= 1
    return tb


# ------------------------------------------------------------------ wrapper
@jax.jit
def deltanet_forward(x, params):
    B, L, H = x.shape
    E = params["wq_t"].shape[1]
    TB = _pick_tb(B, L, H, E)
    wslab, vslab, wlay = _pack_params(params, L, H, E)
    kernel = functools.partial(_deltanet_kernel, H=H, E=E, L=L, TB=TB, wlay=wlay)
    return pl.pallas_call(
        kernel,
        out_shape=jax.ShapeDtypeStruct((B, L, H), x.dtype),
        grid=(B // TB,),
        in_specs=[pl.BlockSpec((TB, L, H), lambda i: (i, 0, 0)),
                  pl.BlockSpec(wslab.shape, lambda i: (0, 0)),
                  pl.BlockSpec(vslab.shape, lambda i: (0, 0))],
        out_specs=pl.BlockSpec((TB, L, H), lambda i: (i, 0, 0)),
        compiler_params=pltpu.CompilerParams(
            dimension_semantics=("parallel",)),   # batch blocks independent
    )(x, wslab, vslab)


# ------------------------------------------------------------------ params
def init_params(key, H, E, max_seq=16):
    f32 = jnp.float32
    std = 0.02
    ks = jax.random.split(key, 8)
    w_in = (std * jax.random.normal(ks[0], (3 * E, H))).astype(f32)        # proj_in.weight
    w_out = (std * jax.random.normal(ks[1], (H, E))).astype(f32)           # proj_out.weight
    rel_pos = (std * jax.random.normal(ks[2], (2 * max_seq - 1, H))).astype(f32)
    lim_b = 1.0 / (2.0 * H) ** 0.5
    w_beta = jax.random.uniform(ks[3], (E, 2 * H), minval=-lim_b, maxval=lim_b, dtype=f32)
    b_beta = jax.random.uniform(ks[4], (E,), minval=-lim_b, maxval=lim_b, dtype=f32)
    w_m1 = (std * jax.random.normal(ks[5], (4 * H, H))).astype(f32)
    w_m2 = (std * jax.random.normal(ks[6], (H, 4 * H))).astype(f32)
    lim_c = 1.0 / (3.0 ** 0.5)
    w_conv = jax.random.uniform(ks[7], (E, 1, 3), minval=-lim_c, maxval=lim_c, dtype=f32)

    return dict(
        g1=jnp.ones((H,), f32), b1=jnp.zeros((H,), f32),
        wq_t=w_in[0:E].T, bq=jnp.zeros((E,), f32),
        wk_t=w_in[E:2 * E].T, bk=jnp.zeros((E,), f32),
        wv_t=w_in[2 * E:].T, bv=jnp.zeros((E,), f32),
        conv_w=w_conv[:, 0, :].T,                       # (3, E)
        rel_pos=rel_pos,                                # (2*max_seq-1, H)
        wbA_t=w_beta[:, :H].T,                          # (H, E)
        wbB_t=w_beta[:, H:].T,                          # (H, E)
        bb=b_beta,                                      # (E,)
        scale=jnp.ones((1,), f32),
        g2=jnp.ones((E,), f32), b2=jnp.zeros((E,), f32),
        wout_t=w_out.T, bout=jnp.zeros((H,), f32),
        wm1_t=w_m1.T, bm1=jnp.zeros((4 * H,), f32),
        wm2_t=w_m2.T, bm2=jnp.zeros((H,), f32),
    )


# ------------------------------------------------------------------ reference (plain JAX, unfused, f32, for sanity check)
def _ref_single(x, P, pos_embed):
    HP = jax.lax.Precision.HIGHEST
    L, Hd = x.shape
    E = P["wq_t"].shape[1]
    xn = _layernorm(x, P["g1"], P["b1"])
    q = jnp.dot(xn, P["wq_t"], precision=HP) + P["bq"]
    k = jnp.dot(xn, P["wk_t"], precision=HP) + P["bk"]
    v = jnp.dot(xn, P["wv_t"], precision=HP) + P["bv"]
    q, k, v = _silu(q), _silu(k), _gelu(v)
    q = _l2_normalize(q) + 0.1 * k
    k = _l2_normalize(k) + 0.1 * q

    def conv(z):
        zero = jnp.zeros((1, z.shape[1]), z.dtype)
        prev = jnp.concatenate([zero, z[:-1]], axis=0)
        nxt = jnp.concatenate([z[1:], zero], axis=0)
        w = P["conv_w"]
        return w[0] * prev + w[1] * z + w[2] * nxt

    q, k, v = conv(q), conv(k), conv(v)
    p = jnp.dot(xn, pos_embed.T, precision=HP)                        # (L, L)
    pos_b = jnp.broadcast_to(jnp.mean(p, axis=-1, keepdims=True), (L, Hd))
    beta = _sigmoid(jnp.dot(xn, P["wbA_t"], precision=HP)
                    + jnp.dot(pos_b, P["wbB_t"], precision=HP) + P["bb"]) * 0.9 + 0.1
    state0 = jnp.zeros((E, E), jnp.float32)
    v_old_t = jax.lax.dot_general(k, state0, (((1,), (1,)), ((), ())), precision=HP)
    v_new = beta * v + (1.0 - beta) * v_old_t
    state = state0 + jax.lax.dot_general(v_new, k, (((0,), (0,)), ((), ())), precision=HP)
    out = jax.lax.dot_general(q, state, (((1,), (1,)), ((), ())), precision=HP)
    out = out * P["scale"]
    out = _layernorm(out, P["g2"], P["b2"])
    out = jnp.dot(out, P["wout_t"], precision=HP) + P["bout"]
    x2 = x + out
    x2n = _layernorm(x2, P["g1"], P["b1"])
    h = _gelu(jnp.dot(x2n, P["wm1_t"], precision=HP) + P["bm1"])
    m = jnp.dot(h, P["wm2_t"], precision=HP) + P["bm2"]
    return x2 + m


def ref_forward(x, params):
    L = x.shape[1]
    pos_embed = params["rel_pos"][:L]
    return jax.vmap(lambda xb: _ref_single(xb, params, pos_embed))(x)


# ------------------------------------------------------------------ main
if __name__ == "__main__":
    B, L, H, E = 4, 8, 32, 64          # batch, seq, hidden_dim, expanded_dim
    MAX_SEQ = 16
    key = jax.random.PRNGKey(0)
    k_param, k_x = jax.random.split(key)
    params = init_params(k_param, H, E, max_seq=MAX_SEQ)
    x = jax.random.normal(k_x, (B, L, H), jnp.float32)

    y = jax.block_until_ready(deltanet_forward(x, params))
    assert y.shape == (B, L, H) and y.dtype == jnp.float32

    y_ref = ref_forward(x, params)
    err = float(jnp.max(jnp.abs(y - y_ref)))
    # Kernel matmuls use bf16 operands (f32 accumulation) per the perf review,
    # while the reference runs f32 at Precision.HIGHEST -> looser tolerance.
    assert err < 5e-2, f"kernel/reference mismatch: max abs err = {err}"

    print("KERNEL_OK")
</pallas_src>

<mosaic_0001>
module attributes {stable_mosaic.version = 11 : i64} {
  func.func @_deltanet_kernel(%arg0: i32, %arg1: memref<2x8x32xf32, #tpu.memory_space<vmem>>, %arg2: memref<192x256xbf16, #tpu.memory_space<vmem>>, %arg3: memref<16x256xf32, #tpu.memory_space<vmem>>, %arg4: memref<2x8x32xf32, #tpu.memory_space<vmem>>) attributes {dimension_semantics = [#tpu.dimension_semantics<parallel>], iteration_bounds = array<i64: 2>, scalar_prefetch = 0 : i64, scratch_operands = 0 : i64, tpu.core_type = #tpu.core_type<tc>, window_params = [{transform_indices = @transform_0, window_bounds = array<i64: 2, 8, 32>}, {pipeline_mode = #tpu.pipeline_mode<synchronous>, transform_indices = @transform_1, window_bounds = array<i64: 192, 256>}, {pipeline_mode = #tpu.pipeline_mode<synchronous>, transform_indices = @transform_2, window_bounds = array<i64: 16, 256>}, {transform_indices = @transform_3, window_bounds = array<i64: 2, 8, 32>}]} {
    %c0 = arith.constant 0 : index
    %c0_0 = arith.constant 0 : index
    %0 = vector.load %arg2[%c0, %c0_0] : memref<192x256xbf16, #tpu.memory_space<vmem>>, vector<32x256xbf16>
    %c32 = arith.constant 32 : index
    %c0_1 = arith.constant 0 : index
    %1 = vector.load %arg2[%c32, %c0_1] : memref<192x256xbf16, #tpu.memory_space<vmem>>, vector<32x128xbf16>
    %c64 = arith.constant 64 : index
    %c0_2 = arith.constant 0 : index
    %2 = vector.load %arg2[%c64, %c0_2] : memref<192x256xbf16, #tpu.memory_space<vmem>>, vector<128x32xbf16>
    %c64_3 = arith.constant 64 : index
    %c128 = arith.constant 128 : index
    %3 = vector.load %arg2[%c64_3, %c128] : memref<192x256xbf16, #tpu.memory_space<vmem>>, vector<64x32xbf16>
    %c0_4 = arith.constant 0 : index
    %c0_5 = arith.constant 0 : index
    %4 = vector.load %arg3[%c0_4, %c0_5] : memref<16x256xf32, #tpu.memory_space<vmem>>, vector<1x32xf32>
    %c1 = arith.constant 1 : index
    %c0_6 = arith.constant 0 : index
    %5 = vector.load %arg3[%c1, %c0_6] : memref<16x256xf32, #tpu.memory_space<vmem>>, vector<1x32xf32>
    %c2 = arith.constant 2 : index
    %c0_7 = arith.constant 0 : index
    %6 = vector.load %arg3[%c2, %c0_7] : memref<16x256xf32, #tpu.memory_space<vmem>>, vector<1x256xf32>
    %c3 = arith.constant 3 : index
    %c0_8 = arith.constant 0 : index
    %7 = vector.load %arg3[%c3, %c0_8] : memref<16x256xf32, #tpu.memory_space<vmem>>, vector<1x64xf32>
    %c4 = arith.constant 4 : index
    %c0_9 = arith.constant 0 : index
    %8 = vector.load %arg3[%c4, %c0_9] : memref<16x256xf32, #tpu.memory_space<vmem>>, vector<1x64xf32>
    %c5 = arith.constant 5 : index
    %c0_10 = arith.constant 0 : index
    %9 = vector.load %arg3[%c5, %c0_10] : memref<16x256xf32, #tpu.memory_space<vmem>>, vector<1x32xf32>
    %c6 = arith.constant 6 : index
    %c0_11 = arith.constant 0 : index
    %10 = vector.load %arg3[%c6, %c0_11] : memref<16x256xf32, #tpu.memory_space<vmem>>, vector<1x128xf32>
    %c7 = arith.constant 7 : index
    %c0_12 = arith.constant 0 : index
    %11 = vector.load %arg3[%c7, %c0_12] : memref<16x256xf32, #tpu.memory_space<vmem>>, vector<1x32xf32>
    %c8 = arith.constant 8 : index
    %c0_13 = arith.constant 0 : index
    %12 = vector.load %arg3[%c8, %c0_13] : memref<16x256xf32, #tpu.memory_space<vmem>>, vector<1x1xf32>
    %c9 = arith.constant 9 : index
    %c0_14 = arith.constant 0 : index
    %13 = vector.load %arg3[%c9, %c0_14] : memref<16x256xf32, #tpu.memory_space<vmem>>, vector<3x192xf32>
    %c0_15 = arith.constant 0 : index
    %c0_16 = arith.constant 0 : index
    %c0_17 = arith.constant 0 : index
    %14 = vector.load %arg1[%c0_15, %c0_16, %c0_17] : memref<2x8x32xf32, #tpu.memory_space<vmem>>, vector<2x8x32xf32>
    %15 = vector.shape_cast %14 : vector<2x8x32xf32> to vector<16x32xf32>
    %cst = arith.constant dense<0.000000e+00> : vector<16xf32>
    %16 = vector.multi_reduction <add>, %15, %cst [1] : vector<16x32xf32> to vector<16xf32>
    %17 = vector.shape_cast %16 : vector<16xf32> to vector<16x1xf32>
    %cst_18 = arith.constant 3.200000e+01 : f32
    %18 = vector.broadcast %cst_18 : f32 to vector<16x1xf32>
    %19 = arith.divf %17, %18 : vector<16x1xf32>
    %20 = vector.broadcast %19 : vector<16x1xf32> to vector<16x32xf32>
    %21 = arith.subf %15, %20 : vector<16x32xf32>
    %22 = arith.mulf %21, %21 : vector<16x32xf32>
    %cst_19 = arith.constant dense<0.000000e+00> : vector<16xf32>
    %23 = vector.multi_reduction <add>, %22, %cst_19 [1] : vector<16x32xf32> to vector<16xf32>
    %24 = vector.shape_cast %23 : vector<16xf32> to vector<16x1xf32>
    %cst_20 = arith.constant 3.200000e+01 : f32
    %25 = vector.broadcast %cst_20 : f32 to vector<16x1xf32>
    %26 = arith.divf %24, %25 : vector<16x1xf32>
    %cst_21 = arith.constant 9.99999974E-6 : f32
    %27 = vector.broadcast %cst_21 : f32 to vector<16x1xf32>
    %28 = arith.addf %26, %27 : vector<16x1xf32>
    %29 = math.rsqrt %28 : vector<16x1xf32>
    %30 = vector.broadcast %29 : vector<16x1xf32> to vector<16x32xf32>
    %31 = arith.mulf %21, %30 : vector<16x32xf32>
    %32 = vector.broadcast %4 : vector<1x32xf32> to vector<16x32xf32>
    %33 = arith.mulf %31, %32 : vector<16x32xf32>
    %34 = vector.broadcast %5 : vector<1x32xf32> to vector<16x32xf32>
    %35 = arith.addf %33, %34 : vector<16x32xf32>
    %36 = arith.truncf %35 : vector<16x32xf32> to vector<16x32xbf16>
    %cst_22 = arith.constant dense<0.000000e+00> : vector<16x256xf32>
    %37 = tpu.matmul %36, %0, %cst_22 {dimension_numbers = #tpu.dot_dimension_numbers<[1], [0], [0], [1], [0, 0, 1, 1], [], []>} : vector<16x32xbf16>, vector<32x256xbf16>, vector<16x256xf32> -> vector<16x256xf32>
    %38 = vector.broadcast %6 : vector<1x256xf32> to vector<16x256xf32>
    %39 = arith.addf %37, %38 : vector<16x256xf32>
    %40 = vector.extract_strided_slice %39 {offsets = [0, 0], sizes = [16, 128], strides = [1, 1]} : vector<16x256xf32> to vector<16x128xf32>
    %cst_23 = arith.constant 5.000000e-01 : f32
    %41 = vector.broadcast %cst_23 : f32 to vector<16x128xf32>
    %42 = arith.mulf %41, %40 : vector<16x128xf32>
    %43 = math.tanh %42 : vector<16x128xf32>
    %cst_24 = arith.constant 1.000000e+00 : f32
    %44 = vector.broadcast %cst_24 : f32 to vector<16x128xf32>
    %45 = arith.addf %43, %44 : vector<16x128xf32>
    %cst_25 = arith.constant 5.000000e-01 : f32
    %46 = vector.broadcast %cst_25 : f32 to vector<16x128xf32>
    %47 = arith.mulf %46, %45 : vector<16x128xf32>
    %48 = arith.mulf %40, %47 : vector<16x128xf32>
    %49 = vector.extract_strided_slice %39 {offsets = [0, 128], sizes = [16, 64], strides = [1, 1]} : vector<16x256xf32> to vector<16x64xf32>
    %cst_26 = arith.constant 5.000000e-01 : f32
    %50 = vector.broadcast %cst_26 : f32 to vector<16x64xf32>
    %51 = arith.mulf %50, %49 : vector<16x64xf32>
    %cst_27 = arith.constant 4.471500e-02 : f32
    %52 = vector.broadcast %cst_27 : f32 to vector<16x64xf32>
    %53 = arith.mulf %52, %49 : vector<16x64xf32>
    %54 = arith.mulf %53, %49 : vector<16x64xf32>
    %55 = arith.mulf %54, %49 : vector<16x64xf32>
    %56 = arith.addf %49, %55 : vector<16x64xf32>
    %cst_28 = arith.constant 0.797884583 : f32
    %57 = vector.broadcast %cst_28 : f32 to vector<16x64xf32>
    %58 = arith.mulf %57, %56 : vector<16x64xf32>
    %59 = math.tanh %58 : vector<16x64xf32>
    %cst_29 = arith.constant 1.000000e+00 : f32
    %60 = vector.broadcast %cst_29 : f32 to vector<16x64xf32>
    %61 = arith.addf %60, %59 : vector<16x64xf32>
    %62 = arith.mulf %51, %61 : vector<16x64xf32>
    %63 = vector.extract_strided_slice %39 {offsets = [0, 192], sizes = [16, 64], strides = [1, 1]} : vector<16x256xf32> to vector<16x64xf32>
    %cst_30 = arith.constant 5.000000e-01 : f32
    %64 = vector.broadcast %cst_30 : f32 to vector<16x64xf32>
    %65 = arith.mulf %64, %63 : vector<16x64xf32>
    %66 = math.tanh %65 : vector<16x64xf32>
    %cst_31 = arith.constant 1.000000e+00 : f32
    %67 = vector.broadcast %cst_31 : f32 to vector<16x64xf32>
    %68 = arith.addf %66, %67 : vector<16x64xf32>
    %cst_32 = arith.constant 5.000000e-01 : f32
    %69 = vector.broadcast %cst_32 : f32 to vector<16x64xf32>
    %70 = arith.mulf %69, %68 : vector<16x64xf32>
    %cst_33 = arith.constant 0.899999976 : f32
    %71 = vector.broadcast %cst_33 : f32 to vector<16x64xf32>
    %72 = arith.mulf %70, %71 : vector<16x64xf32>
    %cst_34 = arith.constant 1.000000e-01 : f32
    %73 = vector.broadcast %cst_34 : f32 to vector<16x64xf32>
    %74 = arith.addf %72, %73 : vector<16x64xf32>
    %75 = vector.extract_strided_slice %48 {offsets = [0, 0], sizes = [16, 64], strides = [1, 1]} : vector<16x128xf32> to vector<16x64xf32>
    %76 = vector.extract_strided_slice %48 {offsets = [0, 64], sizes = [16, 64], strides = [1, 1]} : vector<16x128xf32> to vector<16x64xf32>
    %77 = arith.mulf %75, %75 : vector<16x64xf32>
    %cst_35 = arith.constant dense<0.000000e+00> : vector<16xf32>
    %78 = vector.multi_reduction <add>, %77, %cst_35 [1] : vector<16x64xf32> to vector<16xf32>
    %79 = vector.shape_cast %78 : vector<16xf32> to vector<16x1xf32>
    %cst_36 = arith.constant 1.000000e-24 : f32
    %80 = vector.broadcast %cst_36 : f32 to vector<16x1xf32>
    %81 = arith.maximumf %79, %80 : vector<16x1xf32>
    %82 = math.rsqrt %81 : vector<16x1xf32>
    %83 = vector.broadcast %82 : vector<16x1xf32> to vector<16x64xf32>
    %84 = arith.mulf %75, %83 : vector<16x64xf32>
    %85 = arith.mulf %76, %76 : vector<16x64xf32>
    %cst_37 = arith.constant dense<0.000000e+00> : vector<16xf32>
    %86 = vector.multi_reduction <add>, %85, %cst_37 [1] : vector<16x64xf32> to vector<16xf32>
    %87 = vector.shape_cast %86 : vector<16xf32> to vector<16x1xf32>
    %cst_38 = arith.constant 1.000000e-24 : f32
    %88 = vector.broadcast %cst_38 : f32 to vector<16x1xf32>
    %89 = arith.maximumf %87, %88 : vector<16x1xf32>
    %90 = math.rsqrt %89 : vector<16x1xf32>
    %91 = vector.broadcast %90 : vector<16x1xf32> to vector<16x64xf32>
    %92 = arith.mulf %76, %91 : vector<16x64xf32>
    %cst_39 = arith.constant 1.000000e-01 : f32
    %93 = vector.broadcast %cst_39 : f32 to vector<16x64xf32>
    %94 = arith.mulf %93, %76 : vector<16x64xf32>
    %95 = arith.addf %84, %94 : vector<16x64xf32>
    %cst_40 = arith.constant 1.000000e-01 : f32
    %96 = vector.broadcast %cst_40 : f32 to vector<16x64xf32>
    %97 = arith.mulf %96, %95 : vector<16x64xf32>
    %98 = arith.addf %92, %97 : vector<16x64xf32>
    %99 = tpu.concatenate %95, %98, %62 in 1 : vector<16x64xf32>, vector<16x64xf32>, vector<16x64xf32> -> vector<16x192xf32>
    %100 = tpu.iota {dimensions = array<i32: 0>} : vector<16x192xi32>
    %c8_i32 = arith.constant 8 : i32
    %c0_i32 = arith.constant 0 : i32
    %101 = arith.cmpi eq, %c8_i32, %c0_i32 : i32
    %c1_i32 = arith.constant 1 : i32
    %102 = arith.select %101, %c1_i32, %c8_i32 : i32
    %103 = vector.broadcast %102 : i32 to vector<16x192xi32>
    %104 = arith.remsi %100, %103 : vector<16x192xi32>
    %c0_i32_41 = arith.constant 0 : i32
    %105 = vector.broadcast %c0_i32_41 : i32 to vector<16x192xi32>
    %106 = arith.cmpi ne, %104, %105 : vector<16x192xi32>
    %c0_i32_42 = arith.constant 0 : i32
    %107 = vector.broadcast %c0_i32_42 : i32 to vector<16x192xi32>
    %108 = arith.cmpi slt, %104, %107 : vector<16x192xi32>
    %c0_i32_43 = arith.constant 0 : i32
    %109 = arith.cmpi slt, %102, %c0_i32_43 : i32
    %110 = vector.broadcast %109 : i1 to vector<16x192xi1>
    %111 = vector.broadcast %110 : vector<16x192xi1> to vector<16x192xi1>
    %112 = arith.xori %108, %111 : vector<16x192xi1>
    %113 = arith.andi %112, %106 : vector<16x192xi1>
    %114 = vector.broadcast %102 : i32 to vector<16x192xi32>
    %115 = arith.addi %104, %114 : vector<16x192xi32>
    %116 = arith.select %113, %115, %104 : vector<16x192xi1>, vector<16x192xi32>
    %c0_i32_44 = arith.constant 0 : i32
    %117 = vector.broadcast %c0_i32_44 : i32 to vector<16x192xi32>
    %118 = arith.cmpi ne, %116, %117 : vector<16x192xi32>
    %c8_i32_45 = arith.constant 8 : i32
    %c0_i32_46 = arith.constant 0 : i32
    %119 = arith.cmpi eq, %c8_i32_45, %c0_i32_46 : i32
    %c1_i32_47 = arith.constant 1 : i32
    %120 = arith.select %119, %c1_i32_47, %c8_i32_45 : i32
    %121 = vector.broadcast %120 : i32 to vector<16x192xi32>
    %122 = arith.remsi %100, %121 : vector<16x192xi32>
    %c0_i32_48 = arith.constant 0 : i32
    %123 = vector.broadcast %c0_i32_48 : i32 to vector<16x192xi32>
    %124 = arith.cmpi ne, %122, %123 : vector<16x192xi32>
    %c0_i32_49 = arith.constant 0 : i32
    %125 = vector.broadcast %c0_i32_49 : i32 to vector<16x192xi32>
    %126 = arith.cmpi slt, %122, %125 : vector<16x192xi32>
    %c0_i32_50 = arith.constant 0 : i32
    %127 = arith.cmpi slt, %120, %c0_i32_50 : i32
    %128 = vector.broadcast %127 : i1 to vector<16x192xi1>
    %129 = vector.broadcast %128 : vector<16x192xi1> to vector<16x192xi1>
    %130 = arith.xori %126, %129 : vector<16x192xi1>
    %131 = arith.andi %130, %124 : vector<16x192xi1>
    %132 = vector.broadcast %120 : i32 to vector<16x192xi32>
    %133 = arith.addi %122, %132 : vector<16x192xi32>
    %134 = arith.select %131, %133, %122 : vector<16x192xi1>, vector<16x192xi32>
    %c7_i32 = arith.constant 7 : i32
    %135 = vector.broadcast %c7_i32 : i32 to vector<16x192xi32>
    %136 = arith.cmpi ne, %134, %135 : vector<16x192xi32>
    %c1_i32_51 = arith.constant 1 : i32
    %137 = tpu.dynamic_rotate %99 by %c1_i32_51 dim 0 : vector<16x192xf32>, i32 -> vector<16x192xf32>
    %cst_52 = arith.constant 0.000000e+00 : f32
    %138 = vector.broadcast %cst_52 : f32 to vector<16x192xf32>
    %139 = arith.select %118, %137, %138 : vector<16x192xi1>, vector<16x192xf32>
    %c15_i32 = arith.constant 15 : i32
    %140 = tpu.dynamic_rotate %99 by %c15_i32 dim 0 : vector<16x192xf32>, i32 -> vector<16x192xf32>
    %cst_53 = arith.constant 0.000000e+00 : f32
    %141 = vector.broadcast %cst_53 : f32 to vector<16x192xf32>
    %142 = arith.select %136, %140, %141 : vector<16x192xi1>, vector<16x192xf32>
    %143 = vector.extract_strided_slice %13 {offsets = [0, 0], sizes = [1, 192], strides = [1, 1]} : vector<3x192xf32> to vector<1x192xf32>
    %144 = vector.broadcast %143 : vector<1x192xf32> to vector<16x192xf32>
    %145 = arith.mulf %144, %139 : vector<16x192xf32>
    %146 = vector.extract_strided_slice %13 {offsets = [1, 0], sizes = [1, 192], strides = [1, 1]} : vector<3x192xf32> to vector<1x192xf32>
    %147 = vector.broadcast %146 : vector<1x192xf32> to vector<16x192xf32>
    %148 = arith.mulf %147, %99 : vector<16x192xf32>
    %149 = arith.addf %145, %148 : vector<16x192xf32>
    %150 = vector.extract_strided_slice %13 {offsets = [2, 0], sizes = [1, 192], strides = [1, 1]} : vector<3x192xf32> to vector<1x192xf32>
    %151 = vector.broadcast %150 : vector<1x192xf32> to vector<16x192xf32>
    %152 = arith.mulf %151, %142 : vector<16x192xf32>
    %153 = arith.addf %149, %152 : vector<16x192xf32>
    %154 = vector.extract_strided_slice %153 {offsets = [0, 0], sizes = [16, 64], strides = [1, 1]} : vector<16x192xf32> to vector<16x64xf32>
    %155 = vector.extract_strided_slice %153 {offsets = [0, 64], sizes = [16, 64], strides = [1, 1]} : vector<16x192xf32> to vector<16x64xf32>
    %156 = vector.extract_strided_slice %153 {offsets = [0, 128], sizes = [16, 64], strides = [1, 1]} : vector<16x192xf32> to vector<16x64xf32>
    %157 = arith.mulf %74, %156 : vector<16x64xf32>
    %158 = vector.shape_cast %154 : vector<16x64xf32> to vector<2x8x64xf32>
    %159 = arith.truncf %158 : vector<2x8x64xf32> to vector<2x8x64xbf16>
    %160 = vector.shape_cast %155 : vector<16x64xf32> to vector<2x8x64xf32>
    %161 = arith.truncf %160 : vector<2x8x64xf32> to vector<2x8x64xbf16>
    %162 = vector.shape_cast %157 : vector<16x64xf32> to vector<2x8x64xf32>
    %163 = arith.truncf %162 : vector<2x8x64xf32> to vector<2x8x64xbf16>
    "tpu.trace_start"() <{level = 10 : i32, message = "ble,blf->bef"}> : () -> ()
    %cst_54 = arith.constant dense<0.000000e+00> : vector<2x64x64xf32>
    %164 = tpu.matmul %161, %163, %cst_54 {dimension_numbers = #tpu.dot_dimension_numbers<[1], [1], [2], [2], [0, 0, 0, 2, 1, 2], [0], [0]>} : vector<2x8x64xbf16>, vector<2x8x64xbf16>, vector<2x64x64xf32> -> vector<2x64x64xf32>
    "tpu.trace_stop"() : () -> ()
    %165 = arith.truncf %164 : vector<2x64x64xf32> to vector<2x64x64xbf16>
    "tpu.trace_start"() <{level = 10 : i32, message = "ble,bef->blf"}> : () -> ()
    %cst_55 = arith.constant dense<0.000000e+00> : vector<2x8x64xf32>
    %166 = tpu.matmul %159, %165, %cst_55 {dimension_numbers = #tpu.dot_dimension_numbers<[2], [1], [1], [2], [0, 0, 0, 1, 1, 2], [0], [0]>} : vector<2x8x64xbf16>, vector<2x64x64xbf16>, vector<2x8x64xf32> -> vector<2x8x64xf32>
    "tpu.trace_stop"() : () -> ()
    %167 = vector.shape_cast %166 : vector<2x8x64xf32> to vector<16x64xf32>
    %168 = vector.broadcast %12 : vector<1x1xf32> to vector<16x64xf32>
    %169 = arith.mulf %167, %168 : vector<16x64xf32>
    %cst_56 = arith.constant dense<0.000000e+00> : vector<16xf32>
    %170 = vector.multi_reduction <add>, %169, %cst_56 [1] : vector<16x64xf32> to vector<16xf32>
    %171 = vector.shape_cast %170 : vector<16xf32> to vector<16x1xf32>
    %cst_57 = arith.constant 6.400000e+01 : f32
    %172 = vector.broadcast %cst_57 : f32 to vector<16x1xf32>
    %173 = arith.divf %171, %172 : vector<16x1xf32>
    %174 = vector.broadcast %173 : vector<16x1xf32> to vector<16x64xf32>
    %175 = arith.subf %169, %174 : vector<16x64xf32>
    %176 = arith.mulf %175, %175 : vector<16x64xf32>
    %cst_58 = arith.constant dense<0.000000e+00> : vector<16xf32>
    %177 = vector.multi_reduction <add>, %176, %cst_58 [1] : vector<16x64xf32> to vector<16xf32>
    %178 = vector.shape_cast %177 : vector<16xf32> to vector<16x1xf32>
    %cst_59 = arith.constant 6.400000e+01 : f32
    %179 = vector.broadcast %cst_59 : f32 to vector<16x1xf32>
    %180 = arith.divf %178, %179 : vector<16x1xf32>
    %cst_60 = arith.constant 9.99999974E-6 : f32
    %181 = vector.broadcast %cst_60 : f32 to vector<16x1xf32>
    %182 = arith.addf %180, %181 : vector<16x1xf32>
    %183 = math.rsqrt %182 : vector<16x1xf32>
    %184 = vector.broadcast %183 : vector<16x1xf32> to vector<16x64xf32>
    %185 = arith.mulf %175, %184 : vector<16x64xf32>
    %186 = vector.broadcast %7 : vector<1x64xf32> to vector<16x64xf32>
    %187 = arith.mulf %185, %186 : vector<16x64xf32>
    %188 = vector.broadcast %8 : vector<1x64xf32> to vector<16x64xf32>
    %189 = arith.addf %187, %188 : vector<16x64xf32>
    %190 = arith.truncf %189 : vector<16x64xf32> to vector<16x64xbf16>
    %cst_61 = arith.constant dense<0.000000e+00> : vector<16x32xf32>
    %191 = tpu.matmul %190, %3, %cst_61 {dimension_numbers = #tpu.dot_dimension_numbers<[1], [0], [0], [1], [0, 0, 1, 1], [], []>} : vector<16x64xbf16>, vector<64x32xbf16>, vector<16x32xf32> -> vector<16x32xf32>
    %192 = vector.broadcast %9 : vector<1x32xf32> to vector<16x32xf32>
    %193 = arith.addf %191, %192 : vector<16x32xf32>
    %194 = arith.addf %15, %193 : vector<16x32xf32>
    %cst_62 = arith.constant dense<0.000000e+00> : vector<16xf32>
    %195 = vector.multi_reduction <add>, %194, %cst_62 [1] : vector<16x32xf32> to vector<16xf32>
    %196 = vector.shape_cast %195 : vector<16xf32> to vector<16x1xf32>
    %cst_63 = arith.constant 3.200000e+01 : f32
    %197 = vector.broadcast %cst_63 : f32 to vector<16x1xf32>
    %198 = arith.divf %196, %197 : vector<16x1xf32>
    %199 = vector.broadcast %198 : vector<16x1xf32> to vector<16x32xf32>
    %200 = arith.subf %194, %199 : vector<16x32xf32>
    %201 = arith.mulf %200, %200 : vector<16x32xf32>
    %cst_64 = arith.constant dense<0.000000e+00> : vector<16xf32>
    %202 = vector.multi_reduction <add>, %201, %cst_64 [1] : vector<16x32xf32> to vector<16xf32>
    %203 = vector.shape_cast %202 : vector<16xf32> to vector<16x1xf32>
    %cst_65 = arith.constant 3.200000e+01 : f32
    %204 = vector.broadcast %cst_65 : f32 to vector<16x1xf32>
    %205 = arith.divf %203, %204 : vector<16x1xf32>
    %cst_66 = arith.constant 9.99999974E-6 : f32
    %206 = vector.broadcast %cst_66 : f32 to vector<16x1xf32>
    %207 = arith.addf %205, %206 : vector<16x1xf32>
    %208 = math.rsqrt %207 : vector<16x1xf32>
    %209 = vector.broadcast %208 : vector<16x1xf32> to vector<16x32xf32>
    %210 = arith.mulf %200, %209 : vector<16x32xf32>
    %211 = vector.broadcast %4 : vector<1x32xf32> to vector<16x32xf32>
    %212 = arith.mulf %210, %211 : vector<16x32xf32>
    %213 = vector.broadcast %5 : vector<1x32xf32> to vector<16x32xf32>
    %214 = arith.addf %212, %213 : vector<16x32xf32>
    %215 = arith.truncf %214 : vector<16x32xf32> to vector<16x32xbf16>
    %cst_67 = arith.constant dense<0.000000e+00> : vector<16x128xf32>
    %216 = tpu.matmul %215, %1, %cst_67 {dimension_numbers = #tpu.dot_dimension_numbers<[1], [0], [0], [1], [0, 0, 1, 1], [], []>} : vector<16x32xbf16>, vector<32x128xbf16>, vector<16x128xf32> -> vector<16x128xf32>
    %217 = vector.broadcast %10 : vector<1x128xf32> to vector<16x128xf32>
    %218 = arith.addf %216, %217 : vector<16x128xf32>
    %cst_68 = arith.constant 5.000000e-01 : f32
    %219 = vector.broadcast %cst_68 : f32 to vector<16x128xf32>
    %220 = arith.mulf %219, %218 : vector<16x128xf32>
    %cst_69 = arith.constant 4.471500e-02 : f32
    %221 = vector.broadcast %cst_69 : f32 to vector<16x128xf32>
    %222 = arith.mulf %221, %218 : vector<16x128xf32>
    %223 = arith.mulf %222, %218 : vector<16x128xf32>
    %224 = arith.mulf %223, %218 : vector<16x128xf32>
    %225 = arith.addf %218, %224 : vector<16x128xf32>
    %cst_70 = arith.constant 0.797884583 : f32
    %226 = vector.broadcast %cst_70 : f32 to vector<16x128xf32>
    %227 = arith.mulf %226, %225 : vector<16x128xf32>
    %228 = math.tanh %227 : vector<16x128xf32>
    %cst_71 = arith.constant 1.000000e+00 : f32
    %229 = vector.broadcast %cst_71 : f32 to vector<16x128xf32>
    %230 = arith.addf %229, %228 : vector<16x128xf32>
    %231 = arith.mulf %220, %230 : vector<16x128xf32>
    %232 = arith.truncf %231 : vector<16x128xf32> to vector<16x128xbf16>
    %cst_72 = arith.constant dense<0.000000e+00> : vector<16x32xf32>
    %233 = tpu.matmul %232, %2, %cst_72 {dimension_numbers = #tpu.dot_dimension_numbers<[1], [0], [0], [1], [0, 0, 1, 1], [], []>} : vector<16x128xbf16>, vector<128x32xbf16>, vector<16x32xf32> -> vector<16x32xf32>
    %234 = vector.broadcast %11 : vector<1x32xf32> to vector<16x32xf32>
    %235 = arith.addf %233, %234 : vector<16x32xf32>
    %236 = arith.addf %194, %235 : vector<16x32xf32>
    %237 = vector.shape_cast %236 : vector<16x32xf32> to vector<2x8x32xf32>
    %c0_73 = arith.constant 0 : index
    %c0_74 = arith.constant 0 : index
    %c0_75 = arith.constant 0 : index
    %238 = vector.load %arg4[%c0_73, %c0_74, %c0_75] : memref<2x8x32xf32, #tpu.memory_space<vmem>>, vector<2x8x32xf32>
    tpu.vector_store %arg4[%c0_73, %c0_74, %c0_75], %237 {strides = array<i32>} : memref<2x8x32xf32, #tpu.memory_space<vmem>>, vector<2x8x32xf32>,
    return
  }
  func.func @transform_0(%arg0: i32) -> (i32, i32, i32) {
    %c0_i32 = arith.constant 0 : i32
    %c0_i32_0 = arith.constant 0 : i32
    %c0_i32_1 = arith.constant 0 : i32
    return %arg0, %c0_i32, %c0_i32_0 : i32, i32, i32
  }
  func.func @transform_1(%arg0: i32) -> (i32, i32) {
    %c0_i32 = arith.constant 0 : i32
    %c0_i32_0 = arith.constant 0 : i32
    %c0_i32_1 = arith.constant 0 : i32
    return %c0_i32, %c0_i32_0 : i32, i32
  }
  func.func @transform_2(%arg0: i32) -> (i32, i32) {
    %c0_i32 = arith.constant 0 : i32
    %c0_i32_0 = arith.constant 0 : i32
    %c0_i32_1 = arith.constant 0 : i32
    return %c0_i32, %c0_i32_0 : i32, i32
  }
  func.func @transform_3(%arg0: i32) -> (i32, i32, i32) {
    %c0_i32 = arith.constant 0 : i32
    %c0_i32_0 = arith.constant 0 : i32
    %c0_i32_1 = arith.constant 0 : i32
    return %arg0, %c0_i32, %c0_i32_0 : i32, i32, i32
  }
}

</mosaic_0001>

<llo_original>
// kernel: deltanet_forward.1
$region0: #{deltanet_forward.1}
  #allocation0 [shape = 'u32[]', space=smem, size = 0x4, offset = 0x4, fixed_abs, tag = 'smem constant byte address 0x4 - core index']
  #allocation1 [shape = 'u32[144,128]{1,0:T(1,128)}', space=vmem, size = 0x12000, scoped, tag = 'internal scratch']
  %s0 = inlined_call_operand.vmem [shape: f32[4,8,32], index: 0, kind: input, shape index: {}]
  %s1 = inlined_call_operand.vmem [shape: bf16[192,256], index: 1, kind: input, shape index: {}]
  %s2 = inlined_call_operand.vmem [shape: f32[16,256], index: 2, kind: input, shape index: {}]
  %s3 = inlined_call_operand.hbm [shape: f32[4,8,32], index: 3, kind: output, shape index: {}]
  %s4 = sld [smem:[#allocation0]]
  $region45: #{deltanet_forward.1} parent=0
    _
  %s6 = ssub.s32 1, %s4
  %s7 = scalar_select 0, %s6, %s4
  $region1: #{deltanet_forward.1} parent=0
    #allocation2 [shape = 'u8[16384]{0}', space=vmem, size = 0x4000, scoped, tag = 'output window, operand 0']
    #allocation3 [shape = 's32[2]{0}', space=sflag, size = 0x8, scoped, tag = 'scoped memory for deltanet_forward.1']
    %8 = vsyncpa [#allocation3], 0
    %s9 = scalar_lea.sflag [#allocation3], 1
    %10 = vsyncpa %s9, 0
    loop: start=0, step=1, limit=4
    $region2: #{deltanet_forward.1} parent=1 // loop_pre_header
      _
    $region3: #{deltanet_forward.1} parent=1 // loop_header
      %s12 = sphi 0, %s16
      %p13 = scmp.ge.s32.totalorder %s12, 4
      %s22 = sphi 0, %s24
      %s25 = sphi 0, %s22
      %s26 = sphi 0, %s25
      %s42 = sphi 0, %s26
      %s46 = sphi 0, %s46
      %s48 = sphi 0, %s46
      %s49 = sphi 0, %s48
      %s63 = sphi 0, %s49
      %s67 = sphi 0, %s67
      %s69 = sphi 0, %s67
      %s70 = sphi 0, %s69
      %s84 = sphi 0, %s70
      %s90 = sphi 0, %s92
      %s93 = sphi 0, %s90
      %s94 = sphi 0, %s93
      %s110 = sphi 0, %s94
    $region4: #{deltanet_forward.1} parent=1 // loop_header_branch
      %15 = sbr.rel (%p13) target = $region8
    $region5: #{deltanet_forward.1} parent=1 // loop_body
      %s17 = ssub.s32 %s12, 1
      %s18 = ssub.s32 %s12, 2
      %s19 = sadd.s32 %s12, 1
      %s20 = ssub.s32 %s12, %s19
      %p21 = scmp.eq.s32.totalorder %s20, 0
      %s23 = sadd.s32 %s22, 1
      %s24 = scalar_select %p21, %s22, %s23
      %p27 = pneg %p21
      %p28 = scmp.eq.s32.totalorder %s12, 1
      %p29 = por %p27, %p28
      %p30 = scmp.ne.s32.totalorder %s22, %s25
      %p31 = scmp.eq.s32.totalorder %s12, 0
      %p32 = por %p30, %p31
      %p33 = scmp.ne.s32.totalorder %s22, %s25
      %p34 = scmp.eq.s32.totalorder %s17, 1
      %p35 = por %p33, %p34
      %p36 = scmp.ne.s32.totalorder %s25, %s26
      %p37 = scmp.eq.s32.totalorder %s17, 0
      %p38 = por %p36, %p37
      %p39 = scmp.ne.s32.totalorder %s25, %s26
      %p40 = scmp.eq.s32.totalorder %s18, 1
      %p41 = por %p39, %p40
      %p43 = scmp.ne.s32.totalorder %s26, %s42
      %p44 = scmp.eq.s32.totalorder %s18, 0
      %p45 = por %p43, %p44
      %s47 = sadd.s32 %s46, 1
      %p50 = scmp.eq.s32.totalorder %s12, 1
      %p51 = scmp.ne.s32.totalorder %s46, %s48
      %p52 = scmp.eq.s32.totalorder %s12, 0
      %p53 = por %p51, %p52
      %p54 = scmp.ne.s32.totalorder %s46, %s48
      %p55 = scmp.eq.s32.totalorder %s17, 1
      %p56 = por %p54, %p55
      %p57 = scmp.ne.s32.totalorder %s48, %s49
      %p58 = scmp.eq.s32.totalorder %s17, 0
      %p59 = por %p57, %p58
      %p60 = scmp.ne.s32.totalorder %s48, %s49
      %p61 = scmp.eq.s32.totalorder %s18, 1
      %p62 = por %p60, %p61
      %p64 = scmp.ne.s32.totalorder %s49, %s63
      %p65 = scmp.eq.s32.totalorder %s18, 0
      %p66 = por %p64, %p65
      %s68 = sadd.s32 %s67, 1
      %p71 = scmp.eq.s32.totalorder %s12, 1
      %p72 = scmp.ne.s32.totalorder %s67, %s69
      %p73 = scmp.eq.s32.totalorder %s12, 0
      %p74 = por %p72, %p73
      %p75 = scmp.ne.s32.totalorder %s67, %s69
      %p76 = scmp.eq.s32.totalorder %s17, 1
      %p77 = por %p75, %p76
      %p78 = scmp.ne.s32.totalorder %s69, %s70
      %p79 = scmp.eq.s32.totalorder %s17, 0
      %p80 = por %p78, %p79
      %p81 = scmp.ne.s32.totalorder %s69, %s70
      %p82 = scmp.eq.s32.totalorder %s18, 1
      %p83 = por %p81, %p82
      %p85 = scmp.ne.s32.totalorder %s70, %s84
      %p86 = scmp.eq.s32.totalorder %s18, 0
      %p87 = por %p85, %p86
      %s88 = ssub.s32 %s12, %s19
      %p89 = scmp.eq.s32.totalorder %s88, 0
      %s91 = sadd.s32 %s90, 1
      %s92 = scalar_select %p89, %s90, %s91
      %p95 = pneg %p89
      %p96 = scmp.eq.s32.totalorder %s12, 1
      %p97 = por %p95, %p96
      %p98 = scmp.ne.s32.totalorder %s90, %s93
      %p99 = scmp.eq.s32.totalorder %s12, 0
      %p100 = por %p98, %p99
      %p101 = scmp.ne.s32.totalorder %s90, %s93
      %p102 = scmp.eq.s32.totalorder %s17, 1
      %p103 = por %p101, %p102
      %p104 = scmp.ne.s32.totalorder %s93, %s94
      %p105 = scmp.eq.s32.totalorder %s17, 0
      %p106 = por %p104, %p105
      %p107 = scmp.ne.s32.totalorder %s93, %s94
      %p108 = scmp.eq.s32.totalorder %s18, 1
      %p109 = por %p107, %p108
      %p111 = scmp.ne.s32.totalorder %s94, %s110
      %p112 = scmp.eq.s32.totalorder %s18, 0
      %p113 = por %p111, %p112
      %p114 = scmp.le.s32.totalorder 1, %s12
      %p115 = scmp.lt.s32.totalorder %s12, 3
      %p116 = pnand %p114, %p115
      %p117 = pneg %p116
      // Predicated region
      $region9: #{deltanet_forward.1} parent=5 // pred_check
        _
      $region10: #{deltanet_forward.1} parent=5 // pred_check_branch
        %119 = sbr.rel (%p116) target = $region12
      $region11: #{deltanet_forward.1} parent=5 // pred_region
        %s120 = ssub.s32 %s12, 1
        // Predicated region
        $region13: #{deltanet_forward.1} parent=11 // pred_check
          %p121 = pneg %p59
        $region14: #{deltanet_forward.1} parent=11 // pred_check_branch
          %123 = sbr.rel (%p121) target = $region16
        $region15: #{deltanet_forward.1} parent=11 // pred_region
          _
        $region16: #{deltanet_forward.1} parent=11 // pred_fallthru
          _
        // Predicated region
        $region17: #{deltanet_forward.1} parent=11 // pred_check
          %p124 = pneg %p80
        $region18: #{deltanet_forward.1} parent=11 // pred_check_branch
          %126 = sbr.rel (%p124) target = $region20
        $region19: #{deltanet_forward.1} parent=11 // pred_region
          _
        $region20: #{deltanet_forward.1} parent=11 // pred_fallthru
          _
      $region12: #{deltanet_forward.1} parent=5 // pred_fallthru
        _
      %p127 = scmp.lt.s32.totalorder %s12, 2
      // Predicated region
      $region21: #{deltanet_forward.1} parent=5 // pred_check
        %p128 = pneg %p127
      $region22: #{deltanet_forward.1} parent=5 // pred_check_branch
        %130 = sbr.rel (%p128) target = $region24
      $region23: #{deltanet_forward.1} parent=5 // pred_region
        // Predicated region
        $region25: #{deltanet_forward.1} parent=23 // pred_check
          %p131 = pneg %p32
        $region26: #{deltanet_forward.1} parent=23 // pred_check_branch
          %133 = sbr.rel (%p131) target = $region28
        $region27: #{deltanet_forward.1} parent=23 // pred_region
          %s134 = smul.u32 2, %s12
          %p135 = scmp.lt.s32.totalorder %s134, 3
          %s136 = scalar_select %p135, %s134, 3
          %s137 = smul.addr %s136, 8
          %s138 = scalar_lea.vmem %s0, %s137
          %s139 = smul.u32 2, %s12
        $region28: #{deltanet_forward.1} parent=23 // pred_fallthru
          _
      $region24: #{deltanet_forward.1} parent=5 // pred_fallthru
        _
      %p140 = scmp.le.s32.totalorder 1, %s12
      %p141 = scmp.lt.s32.totalorder %s12, 3
      %p142 = pnand %p140, %p141
      %p143 = pneg %p142
      // Predicated region
      $region29: #{deltanet_forward.1} parent=5 // pred_check
        _
      $region30: #{deltanet_forward.1} parent=5 // pred_check_branch
        %145 = sbr.rel (%p142) target = $region32
      $region31: #{deltanet_forward.1} parent=5 // pred_region
        %s146 = ssub.s32 %s12, 1
        %s147 = smul.u32 2, %s17
        %p148 = scmp.lt.s32.totalorder %s147, 3
        %s149 = scalar_select %p148, %s147, 3
        %s150 = smul.addr %s149, 8
        %s151 = scalar_lea.vmem %s0, %s150
        %p152 = pneg %p38
        %p153 = pneg %p35
        %p154 = pneg %p59
        %p155 = pneg %p56
        %p156 = pneg %p80
        %p157 = pneg %p77
        %p158 = pneg %p106
        %p159 = pneg %p103
        %s160 = sand.u32 %s93, 1
        %s161 = scalar_lea.sflag [#allocation3], %s160
        %s162 = sand.u32 %s93, 1
        %s163 = smul.addr %s162, 16
        %s164 = scalar_lea.vmem [#allocation2], %s163
        %s165 = smul.u32 2, %s17
        %p166 = scmp.lt.s32.totalorder %s165, 3
        %s167 = scalar_select %p166, %s165, 3
        %s168 = smul.addr %s167, 8
        %s169 = scalar_lea.vmem %s0, %s168
        %s170 = smul.u32 2, %s17
        %s171 = smul.u32 2, %s17
        %v173 = vld [vmem:[%s1] sm:$0xff]
        %v174 = vld [vmem:[%s1 + $0x8] sm:$0xff]
        %v175 = vld [vmem:[%s1 + $0x10] sm:$0xff]
        %v176 = vld [vmem:[%s1 + $0x18] sm:$0xff]
        %v177 = vld [vmem:[%s1 + $0x20] sm:$0xf]
        %v178 = vld [vmem:[%s1 + $0x28] sm:$0xf]
        %v179 = vld [vmem:[%s1 + $0x30] sm:$0xf]
        %v180 = vld [vmem:[%s1 + $0x38] sm:$0xf]
        %v181 = vld [vmem:[%s1 + $0x40] sm:$0xf]
        %v182 = vld [vmem:[%s1 + $0x48] sm:$0xf]
        %v183 = vld [vmem:[%s1 + $0x50] sm:$0xf]
        %v184 = vld [vmem:[%s1 + $0x58] sm:$0xf]
        %v185 = vld [vmem:[%s1 + $0x60] sm:$0xf]
        %v186 = vld [vmem:[%s1 + $0x68] sm:$0xf]
        %v187 = vld [vmem:[%s1 + $0x70] sm:$0xf]
        %v188 = vld [vmem:[%s1 + $0x78] sm:$0xf]
        %v189 = vld [vmem:[%s1 + $0x80] sm:$0xf]
        %v190 = vld [vmem:[%s1 + $0x88] sm:$0xf]
        %v191 = vld [vmem:[%s1 + $0x90] sm:$0xf]
        %v192 = vld [vmem:[%s1 + $0x98] sm:$0xf]
        %v193 = vld [vmem:[%s1 + $0xa0] sm:$0xf]
        %v194 = vld [vmem:[%s1 + $0xa8] sm:$0xf]
        %v195 = vld [vmem:[%s1 + $0xb0] sm:$0xf]
        %v196 = vld [vmem:[%s1 + $0xb8] sm:$0xf]
        %v197 = vld [vmem:[%s1 + $0x44] sm:$0xf]
        %v198 = vld [vmem:[%s1 + $0x4c] sm:$0xf]
        %v199 = vld [vmem:[%s1 + $0x54] sm:$0xf]
        %v200 = vld [vmem:[%s1 + $0x5c] sm:$0xf]
        %v201 = vld [vmem:[%s1 + $0x64] sm:$0xf]
        %v202 = vld [vmem:[%s1 + $0x6c] sm:$0xf]
        %v203 = vld [vmem:[%s1 + $0x74] sm:$0xf]
        %v204 = vld [vmem:[%s1 + $0x7c] sm:$0xf]
        %v205 = vld [vmem:[%s2] ss:$0 sm:$0xff]
        %v206 = vld [vmem:[%s2 + $0x1] ss:$0 sm:$0xff]
        %s207 = scalar_lea.vmem %s2, 2
        %v208 = vld [vmem:[%s207] ss:$8 sm:$0x3]
        %v209 = vld [vmem:[%s2 + $0x3] ss:$0 sm:$0xff]
        %v210 = vld [vmem:[%s2 + $0x4] ss:$0 sm:$0xff]
        %v211 = vld [vmem:[%s2 + $0x5] ss:$0 sm:$0xff]
        %v212 = vld [vmem:[%s2 + $0x6] ss:$0 sm:$0xff]
        %v213 = vld [vmem:[%s2 + $0x7] ss:$0 sm:$0xff]
        %v214 = vld [vmem:[%s2 + $0x10] ss:$0 sm:$0xff]
        %v215 = vld [vmem:[%s2 + $0x10] sm:$0xe]
        %v216 = vld [vmem:[%s2 + $0x18] sm:$0xe]
        %v217 = vld [vmem:[%s169] sm:$0xff]
        %v218 = vld [vmem:[%s169 + $0x8] sm:$0xff]
        %vm219 = vcmask 261120
        %v220 = vsel %vm219, %v217, 0.0
        %221 = vadd.xlane.f32.xlu0 %v220
        %v222 = vpop.xlane.xlu0 %221
        %v223 = vsel %vm219, %v218, 0.0
        %224 = vadd.xlane.f32.xlu0 %v223
        %v225 = vpop.xlane.xlu0 %224
        %v226 = vrcp.pop 32.0
        %v227 = vmul.f32 %v222, %v226
        %v228 = vmul.f32 %v225, %v226
        %v229 = vsub.f32 %v217, %v227
        %v230 = vsub.f32 %v218, %v228
        %v231 = vmul.f32 %v229, %v229
        %v232 = vmul.f32 %v230, %v230
        %v233 = vsel %vm219, %v231, 0.0
        %234 = vadd.xlane.f32.xlu0 %v233
        %v235 = vpop.xlane.xlu0 %234
        %v236 = vsel %vm219, %v232, 0.0
        %237 = vadd.xlane.f32.xlu0 %v236
        %v238 = vpop.xlane.xlu0 %237
        %v239 = vmul.f32 %v235, %v226
        %v240 = vmul.f32 %v238, %v226
        %v241 = vadd.f32 %v239, 1e-05
        %v242 = vadd.f32 %v240, 1e-05
        %v243 = vrsqrt.pop %v241
        %v244 = vrsqrt.pop %v242
        %v245 = vmul.f32 %v229, %v243
        %v246 = vmul.f32 %v230, %v244
        %v247 = vmul.f32 %v245, %v205
        %v248 = vmul.f32 %v246, %v205
        %v249 = vadd.f32 %v247, %v206
        %v250 = vadd.f32 %v248, %v206
        %v251 = vpack.c.bf16 %v250, %v249
        %v253 = vlaneseq
        %v254 = vshrl.u32 %v253, 7
        %v255 = vsub.s32 0, %v254
        %v256 = vrot.slane %v208, %v255
        %v257 = vlaneseq
        %v258 = vshrl.u32 %v257, 7
        %v259 = vsub.s32 1, %v258
        %v260 = vrot.slane %v208, %v259
        %v267 = vunpack.c.l.b16 %v173
        %v268 = vunpack.c.h.b16 %v173
        %v269 = vunpack.c.l.b16 %v174
        %v270 = vunpack.c.h.b16 %v174
        %v271 = vunpack.c.l.b16 %v175
        %v272 = vunpack.c.h.b16 %v175
        %v273 = vunpack.c.l.b16 %v176
        %v274 = vunpack.c.h.b16 %v176
        %v275 = vpack.c.b16 %v269, %v267
        %v276 = vpack.c.b16 %v270, %v268
        %v277 = vpack.c.b16 %v273, %v271
        %v278 = vpack.c.b16 %v274, %v272
        %v284 = vsel %vm219, %v251, 0
        %286 = vmatprep.subr.bf16.mxu0 %v276
        %287 = vmatpush1.bf16.msra.mxu0 %v275
        %288 = vmatprep.subr.bf16.mxu0 %v278
        %289 = vmatpush1.bf16.msra.mxu0 %v277
        %290 = vmatprep.subr.bf16.mxu0 0
        %291 = vmatpush1.bf16.msra.mxu0 0
        %292 = vmatprep.subr.bf16.mxu0 0
        %293 = vmatpush1.bf16.msra.mxu0 0
        %294 = vmatprep.subr.bf16.mxu0 0
        %295 = vmatpush1.bf16.msra.mxu0 0
        %296 = vmatprep.subr.bf16.mxu0 0
        %297 = vmatpush1.bf16.msra.mxu0 0
        %298 = vmatprep.subr.bf16.mxu0 0
        %299 = vmatpush1.bf16.msra.mxu0 0
        %300 = vmatprep.subr.bf16.mxu0 0
        %301 = vmatpush1.bf16.msra.mxu0 0
        %302 = vmatprep.subr.bf16.mxu0 0
        %303 = vmatpush1.bf16.msra.mxu0 0
        %304 = vmatprep.subr.bf16.mxu0 0
        %305 = vmatpush1.bf16.msra.mxu0 0
        %306 = vmatprep.subr.bf16.mxu0 0
        %307 = vmatpush1.bf16.msra.mxu0 0
        %308 = vmatprep.subr.bf16.mxu0 0
        %309 = vmatpush1.bf16.msra.mxu0 0
        %310 = vmatprep.subr.bf16.mxu0 0
        %311 = vmatpush1.bf16.msra.mxu0 0
        %312 = vmatprep.subr.bf16.mxu0 0
        %313 = vmatpush1.bf16.msra.mxu0 0
        %314 = vmatprep.subr.bf16.mxu0 0
        %315 = vmatpush1.bf16.msra.mxu0 0
        %316 = vmatprep.subr.bf16.mxu0 0
        %317 = vmatpush1.bf16.msra.mxu0 0
        %318 = vmatprep.mubr.bf16.mxu0 0
        %319 = vmatmul.mubr.bf16.gmra.mrb[0].mxu0 %v284
        %v320 = vpop.f32.mrb[0].mxu0
        %v321 = vadd.f32 %v256, %v320
        %v322 = vpop.f32.mrb[0].mxu0
        %v323 = vadd.f32 %v260, %v322
        %v324 = vpop.f32.mrb[0].mxu0
        %v325 = vadd.f32 %v256, %v324
        %v326 = vpop.f32.mrb[0].mxu0
        %v327 = vadd.f32 %v260, %v326
        %328 = vdwg.mxu0
        %v329 = vmul.f32 %v321, 0.5
        %v330 = vmul.f32 %v325, 0.5
        %v331 = vtanh.pop %v329
        %v332 = vtanh.pop %v330
        %v333 = vadd.f32 %v331, 1.0
        %v334 = vadd.f32 %v332, 1.0
        %v335 = vmul.f32 %v333, 0.5
        %v336 = vmul.f32 %v334, 0.5
        %v337 = vmul.f32 %v321, %v335
        %v338 = vmul.f32 %v325, %v336
        %v339 = vmul.f32 %v323, 0.5
        %v340 = vmul.f32 %v327, 0.5
        %v341 = vmul.f32 %v323, 0.044715
        %v342 = vmul.f32 %v327, 0.044715
        %v343 = vmul.f32 %v341, %v323
        %v344 = vmul.f32 %v342, %v327
        %v345 = vmul.f32 %v343, %v323
        %v346 = vmul.f32 %v344, %v327
        %v347 = vadd.f32 %v323, %v345
        %v348 = vadd.f32 %v327, %v346
        %v349 = vmul.f32 %v347, 0.7978846
        %v350 = vmul.f32 %v348, 0.7978846
        %v351 = vtanh.pop %v349
        %v352 = vtanh.pop %v350
        %v353 = vadd.f32 %v351, 1.0
        %v354 = vadd.f32 %v352, 1.0
        %v355 = vmul.f32 %v339, %v353
        %v356 = vmul.f32 %v340, %v354
        %v357 = vtanh.pop %v339
        %v358 = vtanh.pop %v340
        %v359 = vadd.f32 %v357, 1.0
        %v360 = vadd.f32 %v358, 1.0
        %v361 = vmul.f32 %v359, 0.5
        %v362 = vmul.f32 %v360, 0.5
        %v363 = vmul.f32 %v361, 0.9
        %v364 = vmul.f32 %v362, 0.9
        %v365 = vadd.f32 %v363, 0.1
        %v366 = vadd.f32 %v364, 0.1
        %v367 = vmul.f32 %v337, %v337
        %v368 = vmul.f32 %v338, %v338
        %vm369 = vcmask 523264
        %v370 = vsel %vm369, %v367, 0.0
        %371 = vadd.xlane.f32.xlu0 %v370
        %v372 = vpop.xlane.xlu0 %371
        %v373 = vsel %vm369, %v368, 0.0
        %374 = vadd.xlane.f32.xlu0 %v373
        %v375 = vpop.xlane.xlu0 %374
        %v376 = vmax.f32 %v372, 1e-24
        %v377 = vmax.f32 %v375, 1e-24
        %v378 = vrsqrt.pop %v376
        %v379 = vrsqrt.pop %v377
        %v380 = vmul.f32 %v337, %v378
        %v381 = vmul.f32 %v338, %v379
        %384 = vrot.lane.b32.xlu0 %v367, 64
        %v385 = vpop.permute.xlu0 %384
        %386 = vrot.lane.b32.xlu0 %v368, 64
        %v387 = vpop.permute.xlu0 %386
        %v390 = vsel %vm369, %v385, 0.0
        %391 = vadd.xlane.f32.xlu0 %v390
        %v392 = vpop.xlane.xlu0 %391
        %v393 = vsel %vm369, %v387, 0.0
        %394 = vadd.xlane.f32.xlu0 %v393
        %v395 = vpop.xlane.xlu0 %394
        %v396 = vmax.f32 %v392, 1e-24
        %v397 = vmax.f32 %v395, 1e-24
        %v398 = vrsqrt.pop %v396
        %v399 = vrsqrt.pop %v397
        %v400 = vmul.f32 %v337, %v398
        %v401 = vmul.f32 %v338, %v399
        %v402 = vmul.f32 %v337, 0.1
        %v403 = vmul.f32 %v338, 0.1
        %406 = vrot.lane.b32.xlu0 %v402, 64
        %v407 = vpop.permute.xlu0 %406
        %408 = vrot.lane.b32.xlu0 %v403, 64
        %v409 = vpop.permute.xlu0 %408
        %v412 = vadd.f32 %v380, %v407
        %v413 = vadd.f32 %v381, %v409
        %v414 = vmul.f32 %v412, 0.1
        %v415 = vmul.f32 %v413, 0.1
        %418 = vrot.lane.b32.xlu0 %v414, 64
        %v419 = vpop.permute.xlu0 %418
        %420 = vrot.lane.b32.xlu0 %v415, 64
        %v421 = vpop.permute.xlu0 %420
        %v424 = vadd.f32 %v400, %v419
        %v425 = vadd.f32 %v401, %v421
        %v426 = vsel %vm369, %v412, %v424
        %v427 = vsel %vm369, %v413, %v425
        %v428 = vlaneseq
        %v429 = vshrl.u32 %v428, 7
        %v430 = vadd.s32 %v429, 8
        %vm431 = vcmp.lt.s32.totalorder %v429, 0
        %v432 = vsub.s32 0, %v429
        %v433 = vsel %vm431, %v432, %v429
        %v434 = vshrl.u32 %v433, 3
        %v435 = vand.u32 %v433, 7
        %v436 = vsub.s32 0, %v435
        %v437 = vsel %vm431, %v436, %v435
        %vm438 = vcmp.lt.s32.totalorder %v430, 0
        %v439 = vsub.s32 0, %v430
        %v440 = vsel %vm438, %v439, %v430
        %v441 = vshrl.u32 %v440, 3
        %v442 = vand.u32 %v440, 7
        %v443 = vsub.s32 0, %v442
        %v444 = vsel %vm438, %v443, %v442
        %vm445 = vcmp.ne.s32.totalorder %v437, 0
        %vm446 = vcmp.ne.s32.totalorder %v444, 0
        %vm447 = vcmp.lt.s32.totalorder %v437, 0
        %vm448 = vcmp.lt.s32.totalorder %v444, 0
        %vm449 = vmand %vm447, %vm445
        %vm450 = vmand %vm448, %vm446
        %v451 = vadd.s32 %v437, 8
        %v452 = vadd.s32 %v444, 8
        %v453 = vsel %vm449, %v451, %v437
        %v454 = vsel %vm450, %v452, %v444
        %vm455 = vcmp.ne.s32.totalorder %v453, 0
        %vm456 = vcmp.ne.s32.totalorder %v454, 0
        %vm457 = vcmp.ne.s32.totalorder %v453, 7
        %vm458 = vcmp.ne.s32.totalorder %v454, 7
        %v459 = vrot.slane %v426, 7
        %v460 = vrot.slane %v355, 7
        %v461 = vrot.slane %v427, 7
        %v462 = vrot.slane %v356, 7
        %vm463 = vcmp.lt.s32.totalorder %v429, 1
        %v464 = vsel %vm463, %v459, %v461
        %v465 = vsel %vm463, %v460, %v462
        %v466 = vsel %vm463, %v461, %v459
        %v467 = vsel %vm463, %v462, %v460
        %v468 = vsel %vm455, %v466, 0.0
        %v469 = vsel %vm455, %v467, 0.0
        %v470 = vsel %vm456, %v464, 0.0
        %v471 = vsel %vm456, %v465, 0.0
        %v472 = vrot.slane %v426, 1
        %v473 = vrot.slane %v355, 1
        %v474 = vrot.slane %v427, 1
        %v475 = vrot.slane %v356, 1
        %vm476 = vcmp.lt.s32.totalorder %v429, 7
        %v477 = vsel %vm476, %v472, %v474
        %v478 = vsel %vm476, %v473, %v475
        %v479 = vsel %vm476, %v474, %v472
        %v480 = vsel %vm476, %v475, %v473
        %v481 = vsel %vm457, %v477, 0.0
        %v482 = vsel %vm457, %v478, 0.0
        %v483 = vsel %vm458, %v479, 0.0
        %v484 = vsel %vm458, %v480, 0.0
        %v485 = vlaneseq
        %v486 = vshrl.u32 %v485, 7
        %v487 = vsub.s32 1, %v486
        %v488 = vrot.slane %v215, %v487
        %v489 = vlaneseq
        %v490 = vshrl.u32 %v489, 7
        %v491 = vsub.s32 1, %v490
        %v492 = vrot.slane %v216, %v491
        %v493 = vmul.f32 %v488, %v468
        %v494 = vmul.f32 %v492, %v469
        %v495 = vmul.f32 %v488, %v470
        %v496 = vmul.f32 %v492, %v471
        %v497 = vlaneseq
        %v498 = vshrl.u32 %v497, 7
        %v499 = vsub.s32 2, %v498
        %v500 = vrot.slane %v215, %v499
        %v501 = vlaneseq
        %v502 = vshrl.u32 %v501, 7
        %v503 = vsub.s32 2, %v502
        %v504 = vrot.slane %v216, %v503
        %v505 = vmul.f32 %v500, %v426
        %v506 = vmul.f32 %v504, %v355
        %v507 = vmul.f32 %v500, %v427
        %v508 = vmul.f32 %v504, %v356
        %v509 = vadd.f32 %v493, %v505
        %v510 = vadd.f32 %v494, %v506
        %v511 = vadd.f32 %v495, %v507
        %v512 = vadd.f32 %v496, %v508
        %v513 = vlaneseq
        %v514 = vshrl.u32 %v513, 7
        %v515 = vsub.s32 3, %v514
        %v516 = vrot.slane %v215, %v515
        %v517 = vlaneseq
        %v518 = vshrl.u32 %v517, 7
        %v519 = vsub.s32 3, %v518
        %v520 = vrot.slane %v216, %v519
        %v521 = vmul.f32 %v516, %v481
        %v522 = vmul.f32 %v520, %v482
        %v523 = vmul.f32 %v516, %v483
        %v524 = vmul.f32 %v520, %v484
        %v525 = vadd.f32 %v509, %v521
        %v526 = vadd.f32 %v510, %v522
        %v527 = vadd.f32 %v511, %v523
        %v528 = vadd.f32 %v512, %v524
        %531 = vrot.lane.b32.xlu0 %v526, 64
        %v532 = vpop.permute.xlu0 %531
        %533 = vrot.lane.b32.xlu0 %v528, 64
        %v534 = vpop.permute.xlu0 %533
        %v537 = vmul.f32 %v365, %v532
        %v538 = vmul.f32 %v366, %v534
        %v539 = vpack.c.bf16 %v525, %v525
        %v540 = vpack.c.bf16 %v527, %v527
        %v541 = vpack.c.bf16 %v537, %v537
        %v542 = vpack.c.bf16 %v538, %v538
        %544 = vrot.lane.b32.xlu0 %v539, 64
        %v545 = vpop.permute.xlu0 %544
        %547 = vxpose.xlu0.c.b16.start [1/8] %v545, 128
        %548 = vxpose.xlu0.c.b16.cont [2/8] 0, 128
        %549 = vxpose.xlu0.c.b16.cont [3/8] 0, 128
        %550 = vxpose.xlu0.c.b16.cont [4/8] 0, 128
        %551 = vxpose.xlu0.c.b16.cont [5/8] 0, 128
        %552 = vxpose.xlu0.c.b16.cont [6/8] 0, 128
        %553 = vxpose.xlu0.c.b16.cont [7/8] 0, 128
        %554 = vxpose.xlu0.c.b16.end [8/8] 0, 128
        %v555 = vpop.trf.xlu0
        %v556 = vpop.trf.xlu0
        %v557 = vpop.trf.xlu0
        %v558 = vpop.trf.xlu0
        %v559 = vpop.trf.xlu0
        %v560 = vpop.trf.xlu0
        %v561 = vpop.trf.xlu0
        %v562 = vpop.trf.xlu0
        %564 = vrot.lane.b32.xlu0 %v541, 64
        %v565 = vpop.permute.xlu0 %564
        %vm566 = vcmask 64512
        %v568 = vsel %vm566, %v555, 0
        %v571 = vsel %vm566, %v556, 0
        %v574 = vsel %vm566, %v557, 0
        %v577 = vsel %vm566, %v558, 0
        %vm579 = vcmask 1043456
        %v581 = vsel %vm579, %v565, 0
        %583 = vmatprep.subr.bf16.mxu0 0
        %584 = vmatpush1.bf16.msra.mxu0 %v581
        %585 = vmatprep.subr.bf16.mxu0 0
        %586 = vmatpush1.bf16.msra.mxu0 0
        %587 = vmatprep.subr.bf16.mxu0 0
        %588 = vmatpush1.bf16.msra.mxu0 0
        %589 = vmatprep.subr.bf16.mxu0 0
        %590 = vmatpush1.bf16.msra.mxu0 0
        %591 = vmatprep.subr.bf16.mxu0 0
        %592 = vmatpush1.bf16.msra.mxu0 0
        %593 = vmatprep.subr.bf16.mxu0 0
        %594 = vmatpush1.bf16.msra.mxu0 0
        %595 = vmatprep.subr.bf16.mxu0 0
        %596 = vmatpush1.bf16.msra.mxu0 0
        %597 = vmatprep.subr.bf16.mxu0 0
        %598 = vmatpush1.bf16.msra.mxu0 0
        %599 = vmatprep.subr.bf16.mxu0 0
        %600 = vmatpush1.bf16.msra.mxu0 0
        %601 = vmatprep.subr.bf16.mxu0 0
        %602 = vmatpush1.bf16.msra.mxu0 0
        %603 = vmatprep.subr.bf16.mxu0 0
        %604 = vmatpush1.bf16.msra.mxu0 0
        %605 = vmatprep.subr.bf16.mxu0 0
        %606 = vmatpush1.bf16.msra.mxu0 0
        %607 = vmatprep.subr.bf16.mxu0 0
        %608 = vmatpush1.bf16.msra.mxu0 0
        %609 = vmatprep.subr.bf16.mxu0 0
        %610 = vmatpush1.bf16.msra.mxu0 0
        %611 = vmatprep.subr.bf16.mxu0 0
        %612 = vmatpush1.bf16.msra.mxu0 0
        %613 = vmatprep.subr.bf16.mxu0 0
        %614 = vmatpush1.bf16.msra.mxu0 0
        %615 = vmatprep.mubr.bf16.mxu0 0
        %616 = vmatmul.mubr.bf16.gmra.mrb[0].mxu0 %v568
        %v617 = vpop.f32.mrb[0].mxu0
        %v618 = vadd.f32 0.0, %v617
        %v619 = vpop.f32.mrb[0].mxu0
        %v620 = vpop.f32.mrb[0].mxu0
        %v621 = vadd.f32 0.0, %v620
        %v622 = vpop.f32.mrb[0].mxu0
        %623 = vmatprep.mubr.bf16.mxu0 0
        %624 = vmatmul.mubr.bf16.gmra.mrb[0].mxu0 %v571
        %v625 = vpop.f32.mrb[0].mxu0
        %v626 = vadd.f32 0.0, %v625
        %v627 = vpop.f32.mrb[0].mxu0
        %v628 = vpop.f32.mrb[0].mxu0
        %v629 = vadd.f32 0.0, %v628
        %v630 = vpop.f32.mrb[0].mxu0
        %631 = vmatprep.mubr.bf16.mxu0 0
        %632 = vmatmul.mubr.bf16.gmra.mrb[0].mxu0 %v574
        %v633 = vpop.f32.mrb[0].mxu0
        %v634 = vadd.f32 0.0, %v633
        %v635 = vpop.f32.mrb[0].mxu0
        %v636 = vpop.f32.mrb[0].mxu0
        %v637 = vadd.f32 0.0, %v636
        %v638 = vpop.f32.mrb[0].mxu0
        %639 = vmatprep.mubr.bf16.mxu0 0
        %640 = vmatmul.mubr.bf16.gmra.mrb[0].mxu0 %v577
        %v641 = vpop.f32.mrb[0].mxu0
        %v642 = vadd.f32 0.0, %v641
        %v643 = vpop.f32.mrb[0].mxu0
        %v644 = vpop.f32.mrb[0].mxu0
        %v645 = vadd.f32 0.0, %v644
        %v646 = vpop.f32.mrb[0].mxu0
        %647 = vdwg.mxu0
        %649 = vrot.lane.b32.xlu0 %v540, 64
        %v650 = vpop.permute.xlu0 %649
        %652 = vxpose.xlu0.c.b16.start [1/8] %v650, 128
        %653 = vxpose.xlu0.c.b16.cont [2/8] 0, 128
        %654 = vxpose.xlu0.c.b16.cont [3/8] 0, 128
        %655 = vxpose.xlu0.c.b16.cont [4/8] 0, 128
        %656 = vxpose.xlu0.c.b16.cont [5/8] 0, 128
        %657 = vxpose.xlu0.c.b16.cont [6/8] 0, 128
        %658 = vxpose.xlu0.c.b16.cont [7/8] 0, 128
        %659 = vxpose.xlu0.c.b16.end [8/8] 0, 128
        %v660 = vpop.trf.xlu0
        %v661 = vpop.trf.xlu0
        %v662 = vpop.trf.xlu0
        %v663 = vpop.trf.xlu0
        %v664 = vpop.trf.xlu0
        %v665 = vpop.trf.xlu0
        %v666 = vpop.trf.xlu0
        %v667 = vpop.trf.xlu0
        %669 = vrot.lane.b32.xlu0 %v542, 64
        %v670 = vpop.permute.xlu0 %669
        %v672 = vsel %vm566, %v660, 0
        %v675 = vsel %vm566, %v661, 0
        %v678 = vsel %vm566, %v662, 0
        %v681 = vsel %vm566, %v663, 0
        %v684 = vsel %vm579, %v670, 0
        %686 = vmatprep.subr.bf16.mxu0 0
        %687 = vmatpush1.bf16.msra.mxu0 %v684
        %688 = vmatprep.subr.bf16.mxu0 0
        %689 = vmatpush1.bf16.msra.mxu0 0
        %690 = vmatprep.subr.bf16.mxu0 0
        %691 = vmatpush1.bf16.msra.mxu0 0
        %692 = vmatprep.subr.bf16.mxu0 0
        %693 = vmatpush1.bf16.msra.mxu0 0
        %694 = vmatprep.subr.bf16.mxu0 0
        %695 = vmatpush1.bf16.msra.mxu0 0
        %696 = vmatprep.subr.bf16.mxu0 0
        %697 = vmatpush1.bf16.msra.mxu0 0
        %698 = vmatprep.subr.bf16.mxu0 0
        %699 = vmatpush1.bf16.msra.mxu0 0
        %700 = vmatprep.subr.bf16.mxu0 0
        %701 = vmatpush1.bf16.msra.mxu0 0
        %702 = vmatprep.subr.bf16.mxu0 0
        %703 = vmatpush1.bf16.msra.mxu0 0
        %704 = vmatprep.subr.bf16.mxu0 0
        %705 = vmatpush1.bf16.msra.mxu0 0
        %706 = vmatprep.subr.bf16.mxu0 0
        %707 = vmatpush1.bf16.msra.mxu0 0
        %708 = vmatprep.subr.bf16.mxu0 0
        %709 = vmatpush1.bf16.msra.mxu0 0
        %710 = vmatprep.subr.bf16.mxu0 0
        %711 = vmatpush1.bf16.msra.mxu0 0
        %712 = vmatprep.subr.bf16.mxu0 0
        %713 = vmatpush1.bf16.msra.mxu0 0
        %714 = vmatprep.subr.bf16.mxu0 0
        %715 = vmatpush1.bf16.msra.mxu0 0
        %716 = vmatprep.subr.bf16.mxu0 0
        %717 = vmatpush1.bf16.msra.mxu0 0
        %718 = vmatprep.mubr.bf16.mxu0 0
        %719 = vmatmul.mubr.bf16.gmra.mrb[0].mxu0 %v672
        %v720 = vpop.f32.mrb[0].mxu0
        %v721 = vadd.f32 0.0, %v720
        %v722 = vpop.f32.mrb[0].mxu0
        %v723 = vpop.f32.mrb[0].mxu0
        %v724 = vadd.f32 0.0, %v723
        %v725 = vpop.f32.mrb[0].mxu0
        %726 = vmatprep.mubr.bf16.mxu0 0
        %727 = vmatmul.mubr.bf16.gmra.mrb[0].mxu0 %v675
        %v728 = vpop.f32.mrb[0].mxu0
        %v729 = vadd.f32 0.0, %v728
        %v730 = vpop.f32.mrb[0].mxu0
        %v731 = vpop.f32.mrb[0].mxu0
        %v732 = vadd.f32 0.0, %v731
        %v733 = vpop.f32.mrb[0].mxu0
        %734 = vmatprep.mubr.bf16.mxu0 0
        %735 = vmatmul.mubr.bf16.gmra.mrb[0].mxu0 %v678
        %v736 = vpop.f32.mrb[0].mxu0
        %v737 = vadd.f32 0.0, %v736
        %v738 = vpop.f32.mrb[0].mxu0
        %v739 = vpop.f32.mrb[0].mxu0
        %v740 = vadd.f32 0.0, %v739
        %v741 = vpop.f32.mrb[0].mxu0
        %742 = vmatprep.mubr.bf16.mxu0 0
        %743 = vmatmul.mubr.bf16.gmra.mrb[0].mxu0 %v681
        %v744 = vpop.f32.mrb[0].mxu0
        %v745 = vadd.f32 0.0, %v744
        %v746 = vpop.f32.mrb[0].mxu0
        %v747 = vpop.f32.mrb[0].mxu0
        %v748 = vadd.f32 0.0, %v747
        %v749 = vpop.f32.mrb[0].mxu0
        %750 = vdwg.mxu0
        %v751 = vpack.c.bf16 %v621, %v618
        %v752 = vpack.c.bf16 %v629, %v626
        %v753 = vpack.c.bf16 %v637, %v634
        %v754 = vpack.c.bf16 %v645, %v642
        %v755 = vpack.c.bf16 %v724, %v721
        %v756 = vpack.c.bf16 %v732, %v729
        %v757 = vpack.c.bf16 %v740, %v737
        %v758 = vpack.c.bf16 %v748, %v745
        %v760 = vsel %vm369, %v539, 0
        %762 = vmatprep.subr.bf16.mxu0 0
        %763 = vmatpush1.bf16.msra.mxu0 %v751
        %764 = vmatprep.subr.bf16.mxu0 0
        %765 = vmatpush1.bf16.msra.mxu0 %v752
        %766 = vmatprep.subr.bf16.mxu0 0
        %767 = vmatpush1.bf16.msra.mxu0 %v753
        %768 = vmatprep.subr.bf16.mxu0 0
        %769 = vmatpush1.bf16.msra.mxu0 %v754
        %770 = vmatprep.subr.bf16.mxu0 0
        %771 = vmatpush1.bf16.msra.mxu0 0
        %772 = vmatprep.subr.bf16.mxu0 0
        %773 = vmatpush1.bf16.msra.mxu0 0
        %774 = vmatprep.subr.bf16.mxu0 0
        %775 = vmatpush1.bf16.msra.mxu0 0
        %776 = vmatprep.subr.bf16.mxu0 0
        %777 = vmatpush1.bf16.msra.mxu0 0
        %778 = vmatprep.subr.bf16.mxu0 0
        %779 = vmatpush1.bf16.msra.mxu0 0
        %780 = vmatprep.subr.bf16.mxu0 0
        %781 = vmatpush1.bf16.msra.mxu0 0
        %782 = vmatprep.subr.bf16.mxu0 0
        %783 = vmatpush1.bf16.msra.mxu0 0
        %784 = vmatprep.subr.bf16.mxu0 0
        %785 = vmatpush1.bf16.msra.mxu0 0
        %786 = vmatprep.subr.bf16.mxu0 0
        %787 = vmatpush1.bf16.msra.mxu0 0
        %788 = vmatprep.subr.bf16.mxu0 0
        %789 = vmatpush1.bf16.msra.mxu0 0
        %790 = vmatprep.subr.bf16.mxu0 0
        %791 = vmatpush1.bf16.msra.mxu0 0
        %792 = vmatprep.subr.bf16.mxu0 0
        %793 = vmatpush1.bf16.msra.mxu0 0
        %794 = vmatprep.mubr.bf16.mxu0 0
        %795 = vmatmul.mubr.bf16.gmra.mrb[0].mxu0 %v760
        %v796 = vpop.f32.mrb[0].mxu0
        %v797 = vadd.f32 0.0, %v796
        %v798 = vpop.f32.mrb[0].mxu0
        %v799 = vpop.f32.mrb[0].mxu0
        %v800 = vpop.f32.mrb[0].mxu0
        %801 = vdwg.mxu0
        %v803 = vsel %vm369, %v540, 0
        %805 = vmatprep.subr.bf16.mxu0 0
        %806 = vmatpush1.bf16.msra.mxu0 %v755
        %807 = vmatprep.subr.bf16.mxu0 0
        %808 = vmatpush1.bf16.msra.mxu0 %v756
        %809 = vmatprep.subr.bf16.mxu0 0
        %810 = vmatpush1.bf16.msra.mxu0 %v757
        %811 = vmatprep.subr.bf16.mxu0 0
        %812 = vmatpush1.bf16.msra.mxu0 %v758
        %813 = vmatprep.subr.bf16.mxu0 0
        %814 = vmatpush1.bf16.msra.mxu0 0
        %815 = vmatprep.subr.bf16.mxu0 0
        %816 = vmatpush1.bf16.msra.mxu0 0
        %817 = vmatprep.subr.bf16.mxu0 0
        %818 = vmatpush1.bf16.msra.mxu0 0
        %819 = vmatprep.subr.bf16.mxu0 0
        %820 = vmatpush1.bf16.msra.mxu0 0
        %821 = vmatprep.subr.bf16.mxu0 0
        %822 = vmatpush1.bf16.msra.mxu0 0
        %823 = vmatprep.subr.bf16.mxu0 0
        %824 = vmatpush1.bf16.msra.mxu0 0
        %825 = vmatprep.subr.bf16.mxu0 0
        %826 = vmatpush1.bf16.msra.mxu0 0
        %827 = vmatprep.subr.bf16.mxu0 0
        %828 = vmatpush1.bf16.msra.mxu0 0
        %829 = vmatprep.subr.bf16.mxu0 0
        %830 = vmatpush1.bf16.msra.mxu0 0
        %831 = vmatprep.subr.bf16.mxu0 0
        %832 = vmatpush1.bf16.msra.mxu0 0
        %833 = vmatprep.subr.bf16.mxu0 0
        %834 = vmatpush1.bf16.msra.mxu0 0
        %835 = vmatprep.subr.bf16.mxu0 0
        %836 = vmatpush1.bf16.msra.mxu0 0
        %837 = vmatprep.mubr.bf16.mxu0 0
        %838 = vmatmul.mubr.bf16.gmra.mrb[0].mxu0 %v803
        %v839 = vpop.f32.mrb[0].mxu0
        %v840 = vadd.f32 0.0, %v839
        %v841 = vpop.f32.mrb[0].mxu0
        %v842 = vpop.f32.mrb[0].mxu0
        %v843 = vpop.f32.mrb[0].mxu0
        %844 = vdwg.mxu0
        %846 = vset.pattern.permute.xlu0 0
        %847 = vperm.xlu0 %846, %v214
        %v848 = vpop.permute.xlu0 %847
        %v850 = vmul.f32 %v797, %v848
        %v851 = vmul.f32 %v840, %v848
        %v852 = vsel %vm369, %v850, 0.0
        %853 = vadd.xlane.f32.xlu0 %v852
        %v854 = vpop.xlane.xlu0 %853
        %v855 = vsel %vm369, %v851, 0.0
        %856 = vadd.xlane.f32.xlu0 %v855
        %v857 = vpop.xlane.xlu0 %856
        %v858 = vrcp.pop 64.0
        %v859 = vmul.f32 %v854, %v858
        %v860 = vmul.f32 %v857, %v858
        %v861 = vsub.f32 %v850, %v859
        %v862 = vsub.f32 %v851, %v860
        %v863 = vmul.f32 %v861, %v861
        %v864 = vmul.f32 %v862, %v862
        %v865 = vsel %vm369, %v863, 0.0
        %866 = vadd.xlane.f32.xlu0 %v865
        %v867 = vpop.xlane.xlu0 %866
        %v868 = vsel %vm369, %v864, 0.0
        %869 = vadd.xlane.f32.xlu0 %v868
        %v870 = vpop.xlane.xlu0 %869
        %v871 = vmul.f32 %v867, %v858
        %v872 = vmul.f32 %v870, %v858
        %v873 = vadd.f32 %v871, 1e-05
        %v874 = vadd.f32 %v872, 1e-05
        %v875 = vrsqrt.pop %v873
        %v876 = vrsqrt.pop %v874
        %v877 = vmul.f32 %v861, %v875
        %v878 = vmul.f32 %v862, %v876
        %v879 = vmul.f32 %v877, %v209
        %v880 = vmul.f32 %v878, %v209
        %v881 = vadd.f32 %v879, %v210
        %v882 = vadd.f32 %v880, %v210
        %v883 = vpack.c.bf16 %v882, %v881
        %v892 = vunpack.c.l.b16 %v197
        %v893 = vunpack.c.l.b16 %v198
        %v894 = vunpack.c.l.b16 %v199
        %v895 = vunpack.c.l.b16 %v200
        %v896 = vunpack.c.l.b16 %v201
        %v897 = vunpack.c.l.b16 %v202
        %v898 = vunpack.c.l.b16 %v203
        %v899 = vunpack.c.l.b16 %v204
        %v900 = vpack.c.b16 %v893, %v892
        %v901 = vpack.c.b16 %v895, %v894
        %v902 = vpack.c.b16 %v897, %v896
        %v903 = vpack.c.b16 %v899, %v898
        %v909 = vsel %vm369, %v883, 0
        %911 = vmatprep.subr.bf16.mxu0 0
        %912 = vmatpush1.bf16.msra.mxu0 %v900
        %913 = vmatprep.subr.bf16.mxu0 0
        %914 = vmatpush1.bf16.msra.mxu0 %v901
        %915 = vmatprep.subr.bf16.mxu0 0
        %916 = vmatpush1.bf16.msra.mxu0 %v902
        %917 = vmatprep.subr.bf16.mxu0 0
        %918 = vmatpush1.bf16.msra.mxu0 %v903
        %919 = vmatprep.subr.bf16.mxu0 0
        %920 = vmatpush1.bf16.msra.mxu0 0
        %921 = vmatprep.subr.bf16.mxu0 0
        %922 = vmatpush1.bf16.msra.mxu0 0
        %923 = vmatprep.subr.bf16.mxu0 0
        %924 = vmatpush1.bf16.msra.mxu0 0
        %925 = vmatprep.subr.bf16.mxu0 0
        %926 = vmatpush1.bf16.msra.mxu0 0
        %927 = vmatprep.subr.bf16.mxu0 0
        %928 = vmatpush1.bf16.msra.mxu0 0
        %929 = vmatprep.subr.bf16.mxu0 0
        %930 = vmatpush1.bf16.msra.mxu0 0
        %931 = vmatprep.subr.bf16.mxu0 0
        %932 = vmatpush1.bf16.msra.mxu0 0
        %933 = vmatprep.subr.bf16.mxu0 0
        %934 = vmatpush1.bf16.msra.mxu0 0
        %935 = vmatprep.subr.bf16.mxu0 0
        %936 = vmatpush1.bf16.msra.mxu0 0
        %937 = vmatprep.subr.bf16.mxu0 0
        %938 = vmatpush1.bf16.msra.mxu0 0
        %939 = vmatprep.subr.bf16.mxu0 0
        %940 = vmatpush1.bf16.msra.mxu0 0
        %941 = vmatprep.subr.bf16.mxu0 0
        %942 = vmatpush1.bf16.msra.mxu0 0
        %943 = vmatprep.mubr.bf16.mxu0 0
        %944 = vmatmul.mubr.bf16.gmra.mrb[0].mxu0 %v909
        %v945 = vpop.f32.mrb[0].mxu0
        %v946 = vadd.f32 %v211, %v945
        %v947 = vpop.f32.mrb[0].mxu0
        %v948 = vpop.f32.mrb[0].mxu0
        %v949 = vadd.f32 %v211, %v948
        %v950 = vpop.f32.mrb[0].mxu0
        %951 = vdwg.mxu0
        %v952 = vadd.f32 %v217, %v946
        %v953 = vadd.f32 %v218, %v949
        %v954 = vsel %vm219, %v952, 0.0
        %955 = vadd.xlane.f32.xlu0 %v954
        %v956 = vpop.xlane.xlu0 %955
        %v957 = vsel %vm219, %v953, 0.0
        %958 = vadd.xlane.f32.xlu0 %v957
        %v959 = vpop.xlane.xlu0 %958
        %v960 = vmul.f32 %v956, %v226
        %v961 = vmul.f32 %v959, %v226
        %v962 = vsub.f32 %v952, %v960
        %v963 = vsub.f32 %v953, %v961
        %v964 = vmul.f32 %v962, %v962
        %v965 = vmul.f32 %v963, %v963
        %v966 = vsel %vm219, %v964, 0.0
        %967 = vadd.xlane.f32.xlu0 %v966
        %v968 = vpop.xlane.xlu0 %967
        %v969 = vsel %vm219, %v965, 0.0
        %970 = vadd.xlane.f32.xlu0 %v969
        %v971 = vpop.xlane.xlu0 %970
        %v972 = vmul.f32 %v968, %v226
        %v973 = vmul.f32 %v971, %v226
        %v974 = vadd.f32 %v972, 1e-05
        %v975 = vadd.f32 %v973, 1e-05
        %v976 = vrsqrt.pop %v974
        %v977 = vrsqrt.pop %v975
        %v978 = vmul.f32 %v962, %v976
        %v979 = vmul.f32 %v963, %v977
        %v980 = vmul.f32 %v978, %v205
        %v981 = vmul.f32 %v979, %v205
        %v982 = vadd.f32 %v980, %v206
        %v983 = vadd.f32 %v981, %v206
        %v984 = vpack.c.bf16 %v983, %v982
        %v989 = vunpack.c.l.b16 %v177
        %v990 = vunpack.c.l.b16 %v178
        %v991 = vunpack.c.l.b16 %v179
        %v992 = vunpack.c.l.b16 %v180
        %v993 = vpack.c.b16 %v990, %v989
        %v994 = vpack.c.b16 %v992, %v991
        %v998 = vsel %vm219, %v984, 0
        %1000 = vmatprep.subr.bf16.mxu0 0
        %1001 = vmatpush1.bf16.msra.mxu0 %v993
        %1002 = vmatprep.subr.bf16.mxu0 0
        %1003 = vmatpush1.bf16.msra.mxu0 %v994
        %1004 = vmatprep.subr.bf16.mxu0 0
        %1005 = vmatpush1.bf16.msra.mxu0 0
        %1006 = vmatprep.subr.bf16.mxu0 0
        %1007 = vmatpush1.bf16.msra.mxu0 0
        %1008 = vmatprep.subr.bf16.mxu0 0
        %1009 = vmatpush1.bf16.msra.mxu0 0
        %1010 = vmatprep.subr.bf16.mxu0 0
        %1011 = vmatpush1.bf16.msra.mxu0 0
        %1012 = vmatprep.subr.bf16.mxu0 0
        %1013 = vmatpush1.bf16.msra.mxu0 0
        %1014 = vmatprep.subr.bf16.mxu0 0
        %1015 = vmatpush1.bf16.msra.mxu0 0
        %1016 = vmatprep.subr.bf16.mxu0 0
        %1017 = vmatpush1.bf16.msra.mxu0 0
        %1018 = vmatprep.subr.bf16.mxu0 0
        %1019 = vmatpush1.bf16.msra.mxu0 0
        %1020 = vmatprep.subr.bf16.mxu0 0
        %1021 = vmatpush1.bf16.msra.mxu0 0
        %1022 = vmatprep.subr.bf16.mxu0 0
        %1023 = vmatpush1.bf16.msra.mxu0 0
        %1024 = vmatprep.subr.bf16.mxu0 0
        %1025 = vmatpush1.bf16.msra.mxu0 0
        %1026 = vmatprep.subr.bf16.mxu0 0
        %1027 = vmatpush1.bf16.msra.mxu0 0
        %1028 = vmatprep.subr.bf16.mxu0 0
        %1029 = vmatpush1.bf16.msra.mxu0 0
        %1030 = vmatprep.subr.bf16.mxu0 0
        %1031 = vmatpush1.bf16.msra.mxu0 0
        %1032 = vmatprep.mubr.bf16.mxu0 0
        %1033 = vmatmul.mubr.bf16.gmra.mrb[0].mxu0 %v998
        %v1034 = vpop.f32.mrb[0].mxu0
        %v1035 = vadd.f32 %v212, %v1034
        %v1036 = vpop.f32.mrb[0].mxu0
        %v1037 = vpop.f32.mrb[0].mxu0
        %v1038 = vadd.f32 %v212, %v1037
        %v1039 = vpop.f32.mrb[0].mxu0
        %1040 = vdwg.mxu0
        %v1041 = vmul.f32 %v1035, 0.5
        %v1042 = vmul.f32 %v1038, 0.5
        %v1043 = vmul.f32 %v1035, 0.044715
        %v1044 = vmul.f32 %v1038, 0.044715
        %v1045 = vmul.f32 %v1043, %v1035
        %v1046 = vmul.f32 %v1044, %v1038
        %v1047 = vmul.f32 %v1045, %v1035
        %v1048 = vmul.f32 %v1046, %v1038
        %v1049 = vadd.f32 %v1035, %v1047
        %v1050 = vadd.f32 %v1038, %v1048
        %v1051 = vmul.f32 %v1049, 0.7978846
        %v1052 = vmul.f32 %v1050, 0.7978846
        %v1053 = vtanh.pop %v1051
        %v1054 = vtanh.pop %v1052
        %v1055 = vadd.f32 %v1053, 1.0
        %v1056 = vadd.f32 %v1054, 1.0
        %v1057 = vmul.f32 %v1041, %v1055
        %v1058 = vmul.f32 %v1042, %v1056
        %v1059 = vpack.c.bf16 %v1058, %v1057
        %v1076 = vunpack.c.l.b16 %v181
        %v1077 = vunpack.c.l.b16 %v182
        %v1078 = vunpack.c.l.b16 %v183
        %v1079 = vunpack.c.l.b16 %v184
        %v1080 = vunpack.c.l.b16 %v185
        %v1081 = vunpack.c.l.b16 %v186
        %v1082 = vunpack.c.l.b16 %v187
        %v1083 = vunpack.c.l.b16 %v188
        %v1084 = vunpack.c.l.b16 %v189
        %v1085 = vunpack.c.l.b16 %v190
        %v1086 = vunpack.c.l.b16 %v191
        %v1087 = vunpack.c.l.b16 %v192
        %v1088 = vunpack.c.l.b16 %v193
        %v1089 = vunpack.c.l.b16 %v194
        %v1090 = vunpack.c.l.b16 %v195
        %v1091 = vunpack.c.l.b16 %v196
        %v1092 = vpack.c.b16 %v1077, %v1076
        %v1093 = vpack.c.b16 %v1079, %v1078
        %v1094 = vpack.c.b16 %v1081, %v1080
        %v1095 = vpack.c.b16 %v1083, %v1082
        %v1096 = vpack.c.b16 %v1085, %v1084
        %v1097 = vpack.c.b16 %v1087, %v1086
        %v1098 = vpack.c.b16 %v1089, %v1088
        %v1099 = vpack.c.b16 %v1091, %v1090
        %1108 = vmatprep.subr.bf16.mxu0 0
        %1109 = vmatpush1.bf16.msra.mxu0 %v1092
        %1110 = vmatprep.subr.bf16.mxu0 0
        %1111 = vmatpush1.bf16.msra.mxu0 %v1093
        %1112 = vmatprep.subr.bf16.mxu0 0
        %1113 = vmatpush1.bf16.msra.mxu0 %v1094
        %1114 = vmatprep.subr.bf16.mxu0 0
        %1115 = vmatpush1.bf16.msra.mxu0 %v1095
        %1116 = vmatprep.subr.bf16.mxu0 0
        %1117 = vmatpush1.bf16.msra.mxu0 %v1096
        %1118 = vmatprep.subr.bf16.mxu0 0
        %1119 = vmatpush1.bf16.msra.mxu0 %v1097
        %1120 = vmatprep.subr.bf16.mxu0 0
        %1121 = vmatpush1.bf16.msra.mxu0 %v1098
        %1122 = vmatprep.subr.bf16.mxu0 0
        %1123 = vmatpush1.bf16.msra.mxu0 %v1099
        %1124 = vmatprep.subr.bf16.mxu0 0
        %1125 = vmatpush1.bf16.msra.mxu0 0
        %1126 = vmatprep.subr.bf16.mxu0 0
        %1127 = vmatpush1.bf16.msra.mxu0 0
        %1128 = vmatprep.subr.bf16.mxu0 0
        %1129 = vmatpush1.bf16.msra.mxu0 0
        %1130 = vmatprep.subr.bf16.mxu0 0
        %1131 = vmatpush1.bf16.msra.mxu0 0
        %1132 = vmatprep.subr.bf16.mxu0 0
        %1133 = vmatpush1.bf16.msra.mxu0 0
        %1134 = vmatprep.subr.bf16.mxu0 0
        %1135 = vmatpush1.bf16.msra.mxu0 0
        %1136 = vmatprep.subr.bf16.mxu0 0
        %1137 = vmatpush1.bf16.msra.mxu0 0
        %1138 = vmatprep.subr.bf16.mxu0 0
        %1139 = vmatpush1.bf16.msra.mxu0 0
        %1140 = vmatprep.mubr.bf16.mxu0 0
        %1141 = vmatmul.mubr.bf16.gmra.mrb[0].mxu0 %v1059
        %v1142 = vpop.f32.mrb[0].mxu0
        %v1143 = vadd.f32 %v213, %v1142
        %v1144 = vpop.f32.mrb[0].mxu0
        %v1145 = vpop.f32.mrb[0].mxu0
        %v1146 = vadd.f32 %v213, %v1145
        %v1147 = vpop.f32.mrb[0].mxu0
        %1148 = vdwg.mxu0
        %v1149 = vadd.f32 %v952, %v1143
        %v1150 = vadd.f32 %v953, %v1146
        %1151 = vst.msk [vmem:[%s164] sm:$0xff] %vm219, %v1149
        %1152 = vst.msk [vmem:[%s164 + $0x8] sm:$0xff] %vm219, %v1150
        %s1153 = sand.u32 %s93, 1
        %s1154 = scalar_lea.sflag [#allocation3], %s1153
        %s1155 = sand.u32 %s93, 1
        %s1156 = smul.addr %s1155, 16
        %s1157 = scalar_lea.vmem [#allocation2], %s1156
        // Predicated region
        $region33: #{deltanet_forward.1} parent=31 // pred_check
          %p1158 = pneg %p103
        $region34: #{deltanet_forward.1} parent=31 // pred_check_branch
          %1160 = sbr.rel (%p1158) target = $region36
        $region35: #{deltanet_forward.1} parent=31 // pred_region
          %s1161 = smul.u32 2, %s17
          %s1163 = ssub.s32 256, 256
          %1164 = vsyncadd %s1154, %s1163
          %s1165 = smul.addr %s1161, 128
          %s1166 = scalar_lea.hbm %s3, %s1165
          %s1167 = sshll.u32 %s1157, 4
          %s1168 = int_to_ptr.vmem [resolvable:$true] %s1167
          %1173 = dma.vmem_to_hbm [thread:$0]  %s1168, 256, %s1166, %s1154, 128, 128, 8
        $region36: #{deltanet_forward.1} parent=31 // pred_fallthru
          _
      $region32: #{deltanet_forward.1} parent=5 // pred_fallthru
        _
      %p1174 = scmp.le.s32.totalorder 2, %s12
      // Predicated region
      $region37: #{deltanet_forward.1} parent=5 // pred_check
        %p1175 = pneg %p1174
      $region38: #{deltanet_forward.1} parent=5 // pred_check_branch
        %1177 = sbr.rel (%p1175) target = $region40
      $region39: #{deltanet_forward.1} parent=5 // pred_region
        %s1178 = ssub.s32 %s12, 2
        // Predicated region
        $region41: #{deltanet_forward.1} parent=39 // pred_check
          %p1179 = pneg %p109
        $region42: #{deltanet_forward.1} parent=39 // pred_check_branch
          %1181 = sbr.rel (%p1179) target = $region44
        $region43: #{deltanet_forward.1} parent=39 // pred_region
          %s1182 = sand.u32 %s94, 1
          %s1183 = scalar_lea.sflag [#allocation3], %s1182
          %s1184 = sand.u32 %s94, 1
          %s1185 = smul.addr %s1184, 16
          %s1186 = scalar_lea.vmem [#allocation2], %s1185
          %1187 = dma.done %s1183, 256
        $region44: #{deltanet_forward.1} parent=39 // pred_fallthru
          _
      $region40: #{deltanet_forward.1} parent=5 // pred_fallthru
        _
    $region6: #{deltanet_forward.1} parent=1 // loop_footer
      %s16 = sadd.s32 1, %s12
    $region7: #{deltanet_forward.1} parent=1 // loop_footer_branch
      %11 = sbr.rel target = $region3
    $region8: #{deltanet_forward.1} parent=1 // loop_exit
      _
    %1188 = vsyncpa [#allocation3], 1
    %s1189 = scalar_lea.sflag [#allocation3], 1
    %1190 = vsyncpa %s1189, 1

</llo_original>
